<compile_context>
chip_gen: v7x
topology: tpu7x:2x2x1
jax: 0.10.0
libtpu: 0.0.40
codegen_flags: <defaults>
</compile_context>

<pallas_src>
import functools
import numpy as np
import jax
import jax.numpy as jnp
from jax import lax
from jax.experimental import pallas as pl
from jax.experimental.pallas import tpu as pltpu  # noqa: F401  (TPU backend)


# ----------------------------------------------------------------------------
# Fused kernel: input projections + both LSTMs (merged recurrence) + attention
# head + class FCs, one invocation, everything resident in VMEM / vregs.
# Gate layout of every per-LSTM weight/bias is [i, f, o, g] (H lanes each).
# ----------------------------------------------------------------------------
def _node_locator_kernel(L, T, B, H, S3,
                         q_emb_ref, o_emb_ref,
                         wih1_ref, b1_ref, wih2_ref, b2_ref,
                         whh_blk_ref, whh1_ref, whh2_ref,
                         fc1_w_ref, fc1_b_ref, fc2_w_ref, fc2_b_ref,
                         c12_w_ref, c12_b_ref, c11_w_ref, c11_b_ref,
                         out_ref):
    f32 = jnp.float32
    ov = min(L, T)            # overlapped (merged) recurrence steps
    S2 = L // S3

    # ---- Preamble: hoisted input projections, one MXU matmul per LSTM ------
    gxq = jnp.dot(q_emb_ref[...], wih1_ref[...],
                  preferred_element_type=f32) + b1_ref[...]        # (L*B, 4H)
    gxo = jnp.dot(o_emb_ref[...], wih2_ref[...],
                  preferred_element_type=f32) + b2_ref[...]        # (T*B, 4H)

    # Interleaved merged gate layout for the overlapped steps:
    #   [i1 | i2 | f1 | f2 | o1 | o2 | g1 | g2]   (H lanes each)
    gq = gxq[0:ov * B, :]
    go = gxo[0:ov * B, :]
    gx_ov = jnp.concatenate(
        [gq[:, 0 * H:1 * H], go[:, 0 * H:1 * H],     # i
         gq[:, 1 * H:2 * H], go[:, 1 * H:2 * H],     # f
         gq[:, 2 * H:3 * H], go[:, 2 * H:3 * H],     # o
         gq[:, 3 * H:4 * H], go[:, 3 * H:4 * H]],    # g
        axis=1)                                                    # (ov*B, 8H)

    whh_blk = whh_blk_ref[...]                                     # (2H, 8H)

    def single_cell(gx, h, c, whh):
        # Plain single-LSTM cell (leftover steps of the longer sequence only).
        gates = gx + jnp.dot(h, whh, preferred_element_type=f32)   # (B, 4H)
        sg = jax.nn.sigmoid(gates[:, 0:3 * H])                     # i|f|o only
        i = sg[:, 0 * H:1 * H]
        f = sg[:, 1 * H:2 * H]
        o = sg[:, 2 * H:3 * H]
        g = jnp.tanh(gates[:, 3 * H:4 * H])
        c_new = f * c + i * g
        return o * jnp.tanh(c_new), c_new

    # ---- Merged recurrence: one MXU push + one sigmoid + two tanh per step -
    h_cat = jnp.zeros((B, 2 * H), f32)        # [h1 | h2]
    c_cat = jnp.zeros((B, 2 * H), f32)        # [c1 | c2]
    hs = []                                   # per-step query hidden states
    for t in range(ov):
        gates = gx_ov[t * B:(t + 1) * B, :] + jnp.dot(
            h_cat, whh_blk, preferred_element_type=f32)            # (B, 8H)
        sg = jax.nn.sigmoid(gates[:, 0:6 * H])                     # i|f|o, both
        i_cat = sg[:, 0 * H:2 * H]
        f_cat = sg[:, 2 * H:4 * H]
        o_cat = sg[:, 4 * H:6 * H]
        g_cat = jnp.tanh(gates[:, 6 * H:8 * H])
        c_cat = f_cat * c_cat + i_cat * g_cat
        h_cat = o_cat * jnp.tanh(c_cat)
        hs.append(h_cat[:, 0:H])                                   # query h_t

    # ---- Leftover steps of whichever sequence is longer ---------------------
    h2 = h_cat[:, H:2 * H]
    if L > T:
        h1 = h_cat[:, 0:H]
        c1 = c_cat[:, 0:H]
        whh1 = whh1_ref[...]
        for t in range(ov, L):
            h1, c1 = single_cell(gxq[t * B:(t + 1) * B, :], h1, c1, whh1)
            hs.append(h1)
    elif T > L:
        c2 = c_cat[:, H:2 * H]
        whh2 = whh2_ref[...]
        for t in range(ov, T):
            h2, c2 = single_cell(gxo[t * B:(t + 1) * B, :], h2, c2, whh2)

    # ---- attention_fc_1 (all query positions, one matmul) / attention_fc_2 --
    q_all = jnp.concatenate(hs, axis=0)                            # (L*B, H)
    q1 = jnp.dot(q_all, fc1_w_ref[...],
                 preferred_element_type=f32) + fc1_b_ref[...]      # (L*B, H)
    o2 = jnp.dot(h2, fc2_w_ref[...],
                 preferred_element_type=f32) + fc2_b_ref[...]      # (B, H)

    # ---- Valid-only attention scores + softmax over the L positions --------
    # score_t[b] = <q1[t*B + b], o2[b]>  (exactly L*B*H MACs, no mask needed).
    s_list = [jnp.sum(q1[t * B:(t + 1) * B, :] * o2, axis=-1, keepdims=True)
              for t in range(L)]                                   # L x (B, 1)
    m = s_list[0]
    for t in range(1, L):
        m = jnp.maximum(m, s_list[t])
    e_list = [jnp.exp(s - m) for s in s_list]
    denom = e_list[0]
    for t in range(1, L):
        denom = denom + e_list[t]
    inv = 1.0 / denom
    attn = [e * inv for e in e_list]                               # L x (B, 1)

    # ---- Attention weighting fused with the group-sum over S3 --------------
    summed_rows = []
    for s in range(S2):
        l0 = s * S3
        acc = attn[l0] * q1[l0 * B:(l0 + 1) * B, :]
        for j in range(1, S3):
            l = l0 + j
            acc = acc + attn[l] * q1[l * B:(l + 1) * B, :]
        summed_rows.append(acc)                                    # (B, H)
    summed = jnp.concatenate(summed_rows, axis=0)                  # (S2*B, H)

    # ---- class_fc_1_2 then class_fc_1_1 -------------------------------------
    hid = jnp.dot(summed, c12_w_ref[...],
                  preferred_element_type=f32) + c12_b_ref[...]     # (S2*B, 2H)
    preds = jnp.dot(hid, c11_w_ref[...],
                    preferred_element_type=f32) + c11_b_ref[...]   # (S2*B, lbl)
    out_ref[...] = preds.astype(out_ref.dtype)


def _merged_recurrent_weight(whh1, whh2):
    """Block-diagonal recurrent weight (2H, 8H) in the interleaved merged gate
    layout [i1|i2|f1|f2|o1|o2|g1|g2]; rows 0:H multiply h1, rows H:2H h2."""
    H = whh1.shape[0]
    z = jnp.zeros((H, H), whh1.dtype)
    top, bot = [], []
    for k in range(4):            # per-LSTM gate order [i, f, o, g]
        top += [whh1[:, k * H:(k + 1) * H], z]
        bot += [z, whh2[:, k * H:(k + 1) * H]]
    return jnp.concatenate([jnp.concatenate(top, axis=1),
                            jnp.concatenate(bot, axis=1)], axis=0)


# ----------------------------------------------------------------------------
# Full NodeLocator forward. Only the embedding gather (and the tiny output
# transpose) stays in XLA; everything else is one fused pallas_call.
# ----------------------------------------------------------------------------
def node_locator_forward(params, query_data, object_data):
    B, S2, S3 = query_data.shape
    L = S2 * S3
    T = object_data.shape[1]
    H = params["lstm1_whh"].shape[0]
    E = params["embedding"].shape[1]
    label = params["c11_w"].shape[1]
    emb = params["embedding"]

    # Time-major-flat embedded inputs (row = t*B + b): transpose the tiny int
    # index arrays, not the embedded data, so the gather output is already in
    # the layout the in-kernel recurrence consumes.
    q_idx = query_data.reshape(B, L).T        # (L, B)
    o_idx = object_data.T                     # (T, B)
    q_emb = jnp.take(emb, q_idx, axis=0).reshape(L * B, E)
    o_emb = jnp.take(emb, o_idx, axis=0).reshape(T * B, E)

    whh_blk = _merged_recurrent_weight(params["lstm1_whh"], params["lstm2_whh"])

    kernel = functools.partial(_node_locator_kernel, L, T, B, H, S3)
    preds_flat = pl.pallas_call(
        kernel,
        out_shape=jax.ShapeDtypeStruct((S2 * B, label), jnp.float32),
    )(q_emb, o_emb,
      params["lstm1_wih"], params["lstm1_b"],
      params["lstm2_wih"], params["lstm2_b"],
      whh_blk, params["lstm1_whh"], params["lstm2_whh"],
      params["fc1_w"], params["fc1_b"], params["fc2_w"], params["fc2_b"],
      params["c12_w"], params["c12_b"], params["c11_w"], params["c11_b"])

    # Kernel rows are s-major (row = s*B + b); module output is (B, S2, label).
    return jnp.transpose(preds_flat.reshape(S2, B, label), (1, 0, 2))


# ----------------------------------------------------------------------------
# Pure-JAX reference for verification (same [i, f, o, g] parameter layout).
# ----------------------------------------------------------------------------
def _lstm_ref(x_ble, wih, whh, b):
    B = x_ble.shape[0]
    H = whh.shape[0]

    def step(carry, xt):
        h, c = carry
        gates = xt @ wih + h @ whh + b[0]
        i = jax.nn.sigmoid(gates[:, 0 * H:1 * H])
        f = jax.nn.sigmoid(gates[:, 1 * H:2 * H])
        o = jax.nn.sigmoid(gates[:, 2 * H:3 * H])
        g = jnp.tanh(gates[:, 3 * H:4 * H])
        c = f * c + i * g
        h = o * jnp.tanh(c)
        return (h, c), h

    (h_T, _), ys = lax.scan(step,
                            (jnp.zeros((B, H), jnp.float32),
                             jnp.zeros((B, H), jnp.float32)),
                            jnp.transpose(x_ble, (1, 0, 2)))
    return jnp.transpose(ys, (1, 0, 2)), h_T


def forward_ref(params, query_data, object_data):
    B, S2, S3 = query_data.shape
    emb = params["embedding"]
    q_in = jnp.take(emb, query_data.reshape(B, S2 * S3), axis=0)
    o_in = jnp.take(emb, object_data, axis=0)
    q_out, _ = _lstm_ref(q_in, params["lstm1_wih"], params["lstm1_whh"], params["lstm1_b"])
    q_out = q_out @ params["fc1_w"] + params["fc1_b"][0]
    _, h_n = _lstm_ref(o_in, params["lstm2_wih"], params["lstm2_whh"], params["lstm2_b"])
    o_enc = h_n @ params["fc2_w"] + params["fc2_b"][0]              # (B, H)
    scores = jnp.einsum("blh,bh->bl", q_out, o_enc)
    attn = jax.nn.softmax(scores, axis=1)[..., None]
    w = (q_out * attn).reshape(B, S2, S3, -1).sum(axis=2)
    hid = w @ params["c12_w"] + params["c12_b"][0]
    return hid @ params["c11_w"] + params["c11_b"][0]


# ----------------------------------------------------------------------------
# Deterministic parameter init (per-LSTM gate layout [i, f, o, g]).
# ----------------------------------------------------------------------------
def init_params(key, vocab, E, H, label):
    ks = jax.random.split(key, 15)
    u = lambda k, shape, s: jax.random.uniform(k, shape, jnp.float32, -s, s)
    sH = 1.0 / float(np.sqrt(H))
    s2H = 1.0 / float(np.sqrt(2 * H))
    return dict(
        embedding=u(ks[0], (vocab, E), 0.1),
        lstm1_wih=u(ks[1], (E, 4 * H), sH),
        lstm1_whh=u(ks[2], (H, 4 * H), sH),
        lstm1_b=u(ks[3], (1, 4 * H), sH),
        lstm2_wih=u(ks[4], (E, 4 * H), sH),
        lstm2_whh=u(ks[5], (H, 4 * H), sH),
        lstm2_b=u(ks[6], (1, 4 * H), sH),
        fc1_w=u(ks[7], (H, H), sH), fc1_b=u(ks[8], (1, H), sH),
        fc2_w=u(ks[9], (H, H), sH), fc2_b=u(ks[10], (1, H), sH),
        c12_w=u(ks[11], (H, 2 * H), sH), c12_b=u(ks[12], (1, 2 * H), sH),
        c11_w=u(ks[13], (2 * H, label), s2H), c11_b=u(ks[14], (1, label), s2H),
    )


if __name__ == "__main__":
    key = jax.random.PRNGKey(0)
    vocab_size, embedding_size, lstm_size, label_size = 50, 32, 32, 8
    B, S2, S3, T = 2, 4, 2, 6

    kp, kq, ko = jax.random.split(key, 3)
    params = init_params(kp, vocab_size, embedding_size, lstm_size, label_size)
    query_data = jax.random.randint(kq, (B, S2, S3), 0, vocab_size, dtype=jnp.int32)
    object_data = jax.random.randint(ko, (B, T), 0, vocab_size, dtype=jnp.int32)

    fwd = jax.jit(node_locator_forward)
    out = jax.block_until_ready(fwd(params, query_data, object_data))
    assert out.shape == (B, S2, label_size), out.shape

    ref = forward_ref(params, query_data, object_data)
    np.testing.assert_allclose(np.asarray(out), np.asarray(ref), rtol=2e-4, atol=2e-4)
    print("KERNEL_OK")
</pallas_src>

<mosaic_0001>
module attributes {stable_mosaic.version = 11 : i64} {
  func.func @_node_locator_kernel(%arg0: memref<16x32xf32, #tpu.memory_space<vmem>>, %arg1: memref<12x32xf32, #tpu.memory_space<vmem>>, %arg2: memref<32x128xf32, #tpu.memory_space<vmem>>, %arg3: memref<1x128xf32, #tpu.memory_space<vmem>>, %arg4: memref<32x128xf32, #tpu.memory_space<vmem>>, %arg5: memref<1x128xf32, #tpu.memory_space<vmem>>, %arg6: memref<64x256xf32, #tpu.memory_space<vmem>>, %arg7: memref<32x128xf32, #tpu.memory_space<vmem>>, %arg8: memref<32x128xf32, #tpu.memory_space<vmem>>, %arg9: memref<32x32xf32, #tpu.memory_space<vmem>>, %arg10: memref<1x32xf32, #tpu.memory_space<vmem>>, %arg11: memref<32x32xf32, #tpu.memory_space<vmem>>, %arg12: memref<1x32xf32, #tpu.memory_space<vmem>>, %arg13: memref<32x64xf32, #tpu.memory_space<vmem>>, %arg14: memref<1x64xf32, #tpu.memory_space<vmem>>, %arg15: memref<64x8xf32, #tpu.memory_space<vmem>>, %arg16: memref<1x8xf32, #tpu.memory_space<vmem>>, %arg17: memref<8x8xf32, #tpu.memory_space<vmem>>) attributes {dimension_semantics = [], scalar_prefetch = 0 : i64, scratch_operands = 0 : i64, tpu.core_type = #tpu.core_type<tc>} {
    %c0 = arith.constant 0 : index
    %c0_0 = arith.constant 0 : index
    %0 = vector.load %arg0[%c0, %c0_0] : memref<16x32xf32, #tpu.memory_space<vmem>>, vector<16x32xf32>
    %c0_1 = arith.constant 0 : index
    %c0_2 = arith.constant 0 : index
    %1 = vector.load %arg2[%c0_1, %c0_2] : memref<32x128xf32, #tpu.memory_space<vmem>>, vector<32x128xf32>
    %cst = arith.constant dense<0.000000e+00> : vector<16x128xf32>
    %2 = tpu.matmul %0, %1, %cst {dimension_numbers = #tpu.dot_dimension_numbers<[1], [0], [0], [1], [0, 0, 1, 1], [], []>} : vector<16x32xf32>, vector<32x128xf32>, vector<16x128xf32> -> vector<16x128xf32>
    %c0_3 = arith.constant 0 : index
    %c0_4 = arith.constant 0 : index
    %3 = vector.load %arg3[%c0_3, %c0_4] : memref<1x128xf32, #tpu.memory_space<vmem>>, vector<1x128xf32>
    %4 = vector.broadcast %3 : vector<1x128xf32> to vector<16x128xf32>
    %5 = arith.addf %2, %4 : vector<16x128xf32>
    %c0_5 = arith.constant 0 : index
    %c0_6 = arith.constant 0 : index
    %6 = vector.load %arg1[%c0_5, %c0_6] : memref<12x32xf32, #tpu.memory_space<vmem>>, vector<12x32xf32>
    %c0_7 = arith.constant 0 : index
    %c0_8 = arith.constant 0 : index
    %7 = vector.load %arg4[%c0_7, %c0_8] : memref<32x128xf32, #tpu.memory_space<vmem>>, vector<32x128xf32>
    %cst_9 = arith.constant dense<0.000000e+00> : vector<12x128xf32>
    %8 = tpu.matmul %6, %7, %cst_9 {dimension_numbers = #tpu.dot_dimension_numbers<[1], [0], [0], [1], [0, 0, 1, 1], [], []>} : vector<12x32xf32>, vector<32x128xf32>, vector<12x128xf32> -> vector<12x128xf32>
    %c0_10 = arith.constant 0 : index
    %c0_11 = arith.constant 0 : index
    %9 = vector.load %arg5[%c0_10, %c0_11] : memref<1x128xf32, #tpu.memory_space<vmem>>, vector<1x128xf32>
    %10 = vector.broadcast %9 : vector<1x128xf32> to vector<12x128xf32>
    %11 = arith.addf %8, %10 : vector<12x128xf32>
    %12 = vector.extract_strided_slice %5 {offsets = [0, 0], sizes = [12, 128], strides = [1, 1]} : vector<16x128xf32> to vector<12x128xf32>
    %13 = vector.extract_strided_slice %12 {offsets = [0, 0], sizes = [12, 32], strides = [1, 1]} : vector<12x128xf32> to vector<12x32xf32>
    %14 = vector.extract_strided_slice %11 {offsets = [0, 0], sizes = [12, 32], strides = [1, 1]} : vector<12x128xf32> to vector<12x32xf32>
    %15 = vector.extract_strided_slice %12 {offsets = [0, 32], sizes = [12, 32], strides = [1, 1]} : vector<12x128xf32> to vector<12x32xf32>
    %16 = vector.extract_strided_slice %11 {offsets = [0, 32], sizes = [12, 32], strides = [1, 1]} : vector<12x128xf32> to vector<12x32xf32>
    %17 = vector.extract_strided_slice %12 {offsets = [0, 64], sizes = [12, 32], strides = [1, 1]} : vector<12x128xf32> to vector<12x32xf32>
    %18 = vector.extract_strided_slice %11 {offsets = [0, 64], sizes = [12, 32], strides = [1, 1]} : vector<12x128xf32> to vector<12x32xf32>
    %19 = vector.extract_strided_slice %12 {offsets = [0, 96], sizes = [12, 32], strides = [1, 1]} : vector<12x128xf32> to vector<12x32xf32>
    %20 = vector.extract_strided_slice %11 {offsets = [0, 96], sizes = [12, 32], strides = [1, 1]} : vector<12x128xf32> to vector<12x32xf32>
    %21 = tpu.concatenate %13, %14, %15, %16, %17, %18, %19, %20 in 1 : vector<12x32xf32>, vector<12x32xf32>, vector<12x32xf32>, vector<12x32xf32>, vector<12x32xf32>, vector<12x32xf32>, vector<12x32xf32>, vector<12x32xf32> -> vector<12x256xf32>
    %c0_12 = arith.constant 0 : index
    %c0_13 = arith.constant 0 : index
    %22 = vector.load %arg6[%c0_12, %c0_13] : memref<64x256xf32, #tpu.memory_space<vmem>>, vector<64x256xf32>
    %cst_14 = arith.constant 0.000000e+00 : f32
    %23 = vector.broadcast %cst_14 : f32 to vector<2x64xf32>
    %cst_15 = arith.constant 0.000000e+00 : f32
    %24 = vector.broadcast %cst_15 : f32 to vector<2x64xf32>
    %25 = vector.extract_strided_slice %21 {offsets = [0, 0], sizes = [2, 256], strides = [1, 1]} : vector<12x256xf32> to vector<2x256xf32>
    %cst_16 = arith.constant dense<0.000000e+00> : vector<2x256xf32>
    %26 = tpu.matmul %23, %22, %cst_16 {dimension_numbers = #tpu.dot_dimension_numbers<[1], [0], [0], [1], [0, 0, 1, 1], [], []>} : vector<2x64xf32>, vector<64x256xf32>, vector<2x256xf32> -> vector<2x256xf32>
    %27 = arith.addf %25, %26 : vector<2x256xf32>
    %28 = vector.extract_strided_slice %27 {offsets = [0, 0], sizes = [2, 192], strides = [1, 1]} : vector<2x256xf32> to vector<2x192xf32>
    %29 = arith.negf %28 : vector<2x192xf32>
    %30 = math.exp %29 : vector<2x192xf32>
    %cst_17 = arith.constant 1.000000e+00 : f32
    %31 = vector.broadcast %cst_17 : f32 to vector<2x192xf32>
    %32 = arith.addf %31, %30 : vector<2x192xf32>
    %33 = arith.divf %31, %32 : vector<2x192xf32>
    %34 = vector.extract_strided_slice %33 {offsets = [0, 0], sizes = [2, 64], strides = [1, 1]} : vector<2x192xf32> to vector<2x64xf32>
    %35 = vector.extract_strided_slice %33 {offsets = [0, 64], sizes = [2, 64], strides = [1, 1]} : vector<2x192xf32> to vector<2x64xf32>
    %36 = vector.extract_strided_slice %33 {offsets = [0, 128], sizes = [2, 64], strides = [1, 1]} : vector<2x192xf32> to vector<2x64xf32>
    %37 = vector.extract_strided_slice %27 {offsets = [0, 192], sizes = [2, 64], strides = [1, 1]} : vector<2x256xf32> to vector<2x64xf32>
    %38 = math.tanh %37 : vector<2x64xf32>
    %39 = arith.mulf %35, %24 : vector<2x64xf32>
    %40 = arith.mulf %34, %38 : vector<2x64xf32>
    %41 = arith.addf %39, %40 : vector<2x64xf32>
    %42 = math.tanh %41 : vector<2x64xf32>
    %43 = arith.mulf %36, %42 : vector<2x64xf32>
    %44 = vector.extract_strided_slice %43 {offsets = [0, 0], sizes = [2, 32], strides = [1, 1]} : vector<2x64xf32> to vector<2x32xf32>
    %45 = vector.extract_strided_slice %21 {offsets = [2, 0], sizes = [2, 256], strides = [1, 1]} : vector<12x256xf32> to vector<2x256xf32>
    %cst_18 = arith.constant dense<0.000000e+00> : vector<2x256xf32>
    %46 = tpu.matmul %43, %22, %cst_18 {dimension_numbers = #tpu.dot_dimension_numbers<[1], [0], [0], [1], [0, 0, 1, 1], [], []>} : vector<2x64xf32>, vector<64x256xf32>, vector<2x256xf32> -> vector<2x256xf32>
    %47 = arith.addf %45, %46 : vector<2x256xf32>
    %48 = vector.extract_strided_slice %47 {offsets = [0, 0], sizes = [2, 192], strides = [1, 1]} : vector<2x256xf32> to vector<2x192xf32>
    %49 = arith.negf %48 : vector<2x192xf32>
    %50 = math.exp %49 : vector<2x192xf32>
    %cst_19 = arith.constant 1.000000e+00 : f32
    %51 = vector.broadcast %cst_19 : f32 to vector<2x192xf32>
    %52 = arith.addf %51, %50 : vector<2x192xf32>
    %53 = arith.divf %51, %52 : vector<2x192xf32>
    %54 = vector.extract_strided_slice %53 {offsets = [0, 0], sizes = [2, 64], strides = [1, 1]} : vector<2x192xf32> to vector<2x64xf32>
    %55 = vector.extract_strided_slice %53 {offsets = [0, 64], sizes = [2, 64], strides = [1, 1]} : vector<2x192xf32> to vector<2x64xf32>
    %56 = vector.extract_strided_slice %53 {offsets = [0, 128], sizes = [2, 64], strides = [1, 1]} : vector<2x192xf32> to vector<2x64xf32>
    %57 = vector.extract_strided_slice %47 {offsets = [0, 192], sizes = [2, 64], strides = [1, 1]} : vector<2x256xf32> to vector<2x64xf32>
    %58 = math.tanh %57 : vector<2x64xf32>
    %59 = arith.mulf %55, %41 : vector<2x64xf32>
    %60 = arith.mulf %54, %58 : vector<2x64xf32>
    %61 = arith.addf %59, %60 : vector<2x64xf32>
    %62 = math.tanh %61 : vector<2x64xf32>
    %63 = arith.mulf %56, %62 : vector<2x64xf32>
    %64 = vector.extract_strided_slice %63 {offsets = [0, 0], sizes = [2, 32], strides = [1, 1]} : vector<2x64xf32> to vector<2x32xf32>
    %65 = vector.extract_strided_slice %21 {offsets = [4, 0], sizes = [2, 256], strides = [1, 1]} : vector<12x256xf32> to vector<2x256xf32>
    %cst_20 = arith.constant dense<0.000000e+00> : vector<2x256xf32>
    %66 = tpu.matmul %63, %22, %cst_20 {dimension_numbers = #tpu.dot_dimension_numbers<[1], [0], [0], [1], [0, 0, 1, 1], [], []>} : vector<2x64xf32>, vector<64x256xf32>, vector<2x256xf32> -> vector<2x256xf32>
    %67 = arith.addf %65, %66 : vector<2x256xf32>
    %68 = vector.extract_strided_slice %67 {offsets = [0, 0], sizes = [2, 192], strides = [1, 1]} : vector<2x256xf32> to vector<2x192xf32>
    %69 = arith.negf %68 : vector<2x192xf32>
    %70 = math.exp %69 : vector<2x192xf32>
    %cst_21 = arith.constant 1.000000e+00 : f32
    %71 = vector.broadcast %cst_21 : f32 to vector<2x192xf32>
    %72 = arith.addf %71, %70 : vector<2x192xf32>
    %73 = arith.divf %71, %72 : vector<2x192xf32>
    %74 = vector.extract_strided_slice %73 {offsets = [0, 0], sizes = [2, 64], strides = [1, 1]} : vector<2x192xf32> to vector<2x64xf32>
    %75 = vector.extract_strided_slice %73 {offsets = [0, 64], sizes = [2, 64], strides = [1, 1]} : vector<2x192xf32> to vector<2x64xf32>
    %76 = vector.extract_strided_slice %73 {offsets = [0, 128], sizes = [2, 64], strides = [1, 1]} : vector<2x192xf32> to vector<2x64xf32>
    %77 = vector.extract_strided_slice %67 {offsets = [0, 192], sizes = [2, 64], strides = [1, 1]} : vector<2x256xf32> to vector<2x64xf32>
    %78 = math.tanh %77 : vector<2x64xf32>
    %79 = arith.mulf %75, %61 : vector<2x64xf32>
    %80 = arith.mulf %74, %78 : vector<2x64xf32>
    %81 = arith.addf %79, %80 : vector<2x64xf32>
    %82 = math.tanh %81 : vector<2x64xf32>
    %83 = arith.mulf %76, %82 : vector<2x64xf32>
    %84 = vector.extract_strided_slice %83 {offsets = [0, 0], sizes = [2, 32], strides = [1, 1]} : vector<2x64xf32> to vector<2x32xf32>
    %85 = vector.extract_strided_slice %21 {offsets = [6, 0], sizes = [2, 256], strides = [1, 1]} : vector<12x256xf32> to vector<2x256xf32>
    %cst_22 = arith.constant dense<0.000000e+00> : vector<2x256xf32>
    %86 = tpu.matmul %83, %22, %cst_22 {dimension_numbers = #tpu.dot_dimension_numbers<[1], [0], [0], [1], [0, 0, 1, 1], [], []>} : vector<2x64xf32>, vector<64x256xf32>, vector<2x256xf32> -> vector<2x256xf32>
    %87 = arith.addf %85, %86 : vector<2x256xf32>
    %88 = vector.extract_strided_slice %87 {offsets = [0, 0], sizes = [2, 192], strides = [1, 1]} : vector<2x256xf32> to vector<2x192xf32>
    %89 = arith.negf %88 : vector<2x192xf32>
    %90 = math.exp %89 : vector<2x192xf32>
    %cst_23 = arith.constant 1.000000e+00 : f32
    %91 = vector.broadcast %cst_23 : f32 to vector<2x192xf32>
    %92 = arith.addf %91, %90 : vector<2x192xf32>
    %93 = arith.divf %91, %92 : vector<2x192xf32>
    %94 = vector.extract_strided_slice %93 {offsets = [0, 0], sizes = [2, 64], strides = [1, 1]} : vector<2x192xf32> to vector<2x64xf32>
    %95 = vector.extract_strided_slice %93 {offsets = [0, 64], sizes = [2, 64], strides = [1, 1]} : vector<2x192xf32> to vector<2x64xf32>
    %96 = vector.extract_strided_slice %93 {offsets = [0, 128], sizes = [2, 64], strides = [1, 1]} : vector<2x192xf32> to vector<2x64xf32>
    %97 = vector.extract_strided_slice %87 {offsets = [0, 192], sizes = [2, 64], strides = [1, 1]} : vector<2x256xf32> to vector<2x64xf32>
    %98 = math.tanh %97 : vector<2x64xf32>
    %99 = arith.mulf %95, %81 : vector<2x64xf32>
    %100 = arith.mulf %94, %98 : vector<2x64xf32>
    %101 = arith.addf %99, %100 : vector<2x64xf32>
    %102 = math.tanh %101 : vector<2x64xf32>
    %103 = arith.mulf %96, %102 : vector<2x64xf32>
    %104 = vector.extract_strided_slice %103 {offsets = [0, 0], sizes = [2, 32], strides = [1, 1]} : vector<2x64xf32> to vector<2x32xf32>
    %105 = vector.extract_strided_slice %21 {offsets = [8, 0], sizes = [2, 256], strides = [1, 1]} : vector<12x256xf32> to vector<2x256xf32>
    %cst_24 = arith.constant dense<0.000000e+00> : vector<2x256xf32>
    %106 = tpu.matmul %103, %22, %cst_24 {dimension_numbers = #tpu.dot_dimension_numbers<[1], [0], [0], [1], [0, 0, 1, 1], [], []>} : vector<2x64xf32>, vector<64x256xf32>, vector<2x256xf32> -> vector<2x256xf32>
    %107 = arith.addf %105, %106 : vector<2x256xf32>
    %108 = vector.extract_strided_slice %107 {offsets = [0, 0], sizes = [2, 192], strides = [1, 1]} : vector<2x256xf32> to vector<2x192xf32>
    %109 = arith.negf %108 : vector<2x192xf32>
    %110 = math.exp %109 : vector<2x192xf32>
    %cst_25 = arith.constant 1.000000e+00 : f32
    %111 = vector.broadcast %cst_25 : f32 to vector<2x192xf32>
    %112 = arith.addf %111, %110 : vector<2x192xf32>
    %113 = arith.divf %111, %112 : vector<2x192xf32>
    %114 = vector.extract_strided_slice %113 {offsets = [0, 0], sizes = [2, 64], strides = [1, 1]} : vector<2x192xf32> to vector<2x64xf32>
    %115 = vector.extract_strided_slice %113 {offsets = [0, 64], sizes = [2, 64], strides = [1, 1]} : vector<2x192xf32> to vector<2x64xf32>
    %116 = vector.extract_strided_slice %113 {offsets = [0, 128], sizes = [2, 64], strides = [1, 1]} : vector<2x192xf32> to vector<2x64xf32>
    %117 = vector.extract_strided_slice %107 {offsets = [0, 192], sizes = [2, 64], strides = [1, 1]} : vector<2x256xf32> to vector<2x64xf32>
    %118 = math.tanh %117 : vector<2x64xf32>
    %119 = arith.mulf %115, %101 : vector<2x64xf32>
    %120 = arith.mulf %114, %118 : vector<2x64xf32>
    %121 = arith.addf %119, %120 : vector<2x64xf32>
    %122 = math.tanh %121 : vector<2x64xf32>
    %123 = arith.mulf %116, %122 : vector<2x64xf32>
    %124 = vector.extract_strided_slice %123 {offsets = [0, 0], sizes = [2, 32], strides = [1, 1]} : vector<2x64xf32> to vector<2x32xf32>
    %125 = vector.extract_strided_slice %21 {offsets = [10, 0], sizes = [2, 256], strides = [1, 1]} : vector<12x256xf32> to vector<2x256xf32>
    %cst_26 = arith.constant dense<0.000000e+00> : vector<2x256xf32>
    %126 = tpu.matmul %123, %22, %cst_26 {dimension_numbers = #tpu.dot_dimension_numbers<[1], [0], [0], [1], [0, 0, 1, 1], [], []>} : vector<2x64xf32>, vector<64x256xf32>, vector<2x256xf32> -> vector<2x256xf32>
    %127 = arith.addf %125, %126 : vector<2x256xf32>
    %128 = vector.extract_strided_slice %127 {offsets = [0, 0], sizes = [2, 192], strides = [1, 1]} : vector<2x256xf32> to vector<2x192xf32>
    %129 = arith.negf %128 : vector<2x192xf32>
    %130 = math.exp %129 : vector<2x192xf32>
    %cst_27 = arith.constant 1.000000e+00 : f32
    %131 = vector.broadcast %cst_27 : f32 to vector<2x192xf32>
    %132 = arith.addf %131, %130 : vector<2x192xf32>
    %133 = arith.divf %131, %132 : vector<2x192xf32>
    %134 = vector.extract_strided_slice %133 {offsets = [0, 0], sizes = [2, 64], strides = [1, 1]} : vector<2x192xf32> to vector<2x64xf32>
    %135 = vector.extract_strided_slice %133 {offsets = [0, 64], sizes = [2, 64], strides = [1, 1]} : vector<2x192xf32> to vector<2x64xf32>
    %136 = vector.extract_strided_slice %133 {offsets = [0, 128], sizes = [2, 64], strides = [1, 1]} : vector<2x192xf32> to vector<2x64xf32>
    %137 = vector.extract_strided_slice %127 {offsets = [0, 192], sizes = [2, 64], strides = [1, 1]} : vector<2x256xf32> to vector<2x64xf32>
    %138 = math.tanh %137 : vector<2x64xf32>
    %139 = arith.mulf %135, %121 : vector<2x64xf32>
    %140 = arith.mulf %134, %138 : vector<2x64xf32>
    %141 = arith.addf %139, %140 : vector<2x64xf32>
    %142 = math.tanh %141 : vector<2x64xf32>
    %143 = arith.mulf %136, %142 : vector<2x64xf32>
    %144 = vector.extract_strided_slice %143 {offsets = [0, 0], sizes = [2, 32], strides = [1, 1]} : vector<2x64xf32> to vector<2x32xf32>
    %145 = vector.extract_strided_slice %143 {offsets = [0, 32], sizes = [2, 32], strides = [1, 1]} : vector<2x64xf32> to vector<2x32xf32>
    %146 = vector.extract_strided_slice %143 {offsets = [0, 0], sizes = [2, 32], strides = [1, 1]} : vector<2x64xf32> to vector<2x32xf32>
    %147 = vector.extract_strided_slice %141 {offsets = [0, 0], sizes = [2, 32], strides = [1, 1]} : vector<2x64xf32> to vector<2x32xf32>
    %c0_28 = arith.constant 0 : index
    %c0_29 = arith.constant 0 : index
    %148 = vector.load %arg7[%c0_28, %c0_29] : memref<32x128xf32, #tpu.memory_space<vmem>>, vector<32x128xf32>
    %149 = vector.extract_strided_slice %5 {offsets = [12, 0], sizes = [2, 128], strides = [1, 1]} : vector<16x128xf32> to vector<2x128xf32>
    %cst_30 = arith.constant dense<0.000000e+00> : vector<2x128xf32>
    %150 = tpu.matmul %146, %148, %cst_30 {dimension_numbers = #tpu.dot_dimension_numbers<[1], [0], [0], [1], [0, 0, 1, 1], [], []>} : vector<2x32xf32>, vector<32x128xf32>, vector<2x128xf32> -> vector<2x128xf32>
    %151 = arith.addf %149, %150 : vector<2x128xf32>
    %152 = vector.extract_strided_slice %151 {offsets = [0, 0], sizes = [2, 96], strides = [1, 1]} : vector<2x128xf32> to vector<2x96xf32>
    %153 = arith.negf %152 : vector<2x96xf32>
    %154 = math.exp %153 : vector<2x96xf32>
    %cst_31 = arith.constant 1.000000e+00 : f32
    %155 = vector.broadcast %cst_31 : f32 to vector<2x96xf32>
    %156 = arith.addf %155, %154 : vector<2x96xf32>
    %157 = arith.divf %155, %156 : vector<2x96xf32>
    %158 = vector.extract_strided_slice %157 {offsets = [0, 0], sizes = [2, 32], strides = [1, 1]} : vector<2x96xf32> to vector<2x32xf32>
    %159 = vector.extract_strided_slice %157 {offsets = [0, 32], sizes = [2, 32], strides = [1, 1]} : vector<2x96xf32> to vector<2x32xf32>
    %160 = vector.extract_strided_slice %157 {offsets = [0, 64], sizes = [2, 32], strides = [1, 1]} : vector<2x96xf32> to vector<2x32xf32>
    %161 = vector.extract_strided_slice %151 {offsets = [0, 96], sizes = [2, 32], strides = [1, 1]} : vector<2x128xf32> to vector<2x32xf32>
    %162 = math.tanh %161 : vector<2x32xf32>
    %163 = arith.mulf %159, %147 : vector<2x32xf32>
    %164 = arith.mulf %158, %162 : vector<2x32xf32>
    %165 = arith.addf %163, %164 : vector<2x32xf32>
    %166 = math.tanh %165 : vector<2x32xf32>
    %167 = arith.mulf %160, %166 : vector<2x32xf32>
    %168 = vector.extract_strided_slice %5 {offsets = [14, 0], sizes = [2, 128], strides = [1, 1]} : vector<16x128xf32> to vector<2x128xf32>
    %cst_32 = arith.constant dense<0.000000e+00> : vector<2x128xf32>
    %169 = tpu.matmul %167, %148, %cst_32 {dimension_numbers = #tpu.dot_dimension_numbers<[1], [0], [0], [1], [0, 0, 1, 1], [], []>} : vector<2x32xf32>, vector<32x128xf32>, vector<2x128xf32> -> vector<2x128xf32>
    %170 = arith.addf %168, %169 : vector<2x128xf32>
    %171 = vector.extract_strided_slice %170 {offsets = [0, 0], sizes = [2, 96], strides = [1, 1]} : vector<2x128xf32> to vector<2x96xf32>
    %172 = arith.negf %171 : vector<2x96xf32>
    %173 = math.exp %172 : vector<2x96xf32>
    %cst_33 = arith.constant 1.000000e+00 : f32
    %174 = vector.broadcast %cst_33 : f32 to vector<2x96xf32>
    %175 = arith.addf %174, %173 : vector<2x96xf32>
    %176 = arith.divf %174, %175 : vector<2x96xf32>
    %177 = vector.extract_strided_slice %176 {offsets = [0, 0], sizes = [2, 32], strides = [1, 1]} : vector<2x96xf32> to vector<2x32xf32>
    %178 = vector.extract_strided_slice %176 {offsets = [0, 32], sizes = [2, 32], strides = [1, 1]} : vector<2x96xf32> to vector<2x32xf32>
    %179 = vector.extract_strided_slice %176 {offsets = [0, 64], sizes = [2, 32], strides = [1, 1]} : vector<2x96xf32> to vector<2x32xf32>
    %180 = vector.extract_strided_slice %170 {offsets = [0, 96], sizes = [2, 32], strides = [1, 1]} : vector<2x128xf32> to vector<2x32xf32>
    %181 = math.tanh %180 : vector<2x32xf32>
    %182 = arith.mulf %178, %165 : vector<2x32xf32>
    %183 = arith.mulf %177, %181 : vector<2x32xf32>
    %184 = arith.addf %182, %183 : vector<2x32xf32>
    %185 = math.tanh %184 : vector<2x32xf32>
    %186 = arith.mulf %179, %185 : vector<2x32xf32>
    %187 = tpu.concatenate %44, %64, %84, %104, %124, %144, %167, %186 in 0 : vector<2x32xf32>, vector<2x32xf32>, vector<2x32xf32>, vector<2x32xf32>, vector<2x32xf32>, vector<2x32xf32>, vector<2x32xf32>, vector<2x32xf32> -> vector<16x32xf32>
    %c0_34 = arith.constant 0 : index
    %c0_35 = arith.constant 0 : index
    %188 = vector.load %arg9[%c0_34, %c0_35] : memref<32x32xf32, #tpu.memory_space<vmem>>, vector<32x32xf32>
    %cst_36 = arith.constant dense<0.000000e+00> : vector<16x32xf32>
    %189 = tpu.matmul %187, %188, %cst_36 {dimension_numbers = #tpu.dot_dimension_numbers<[1], [0], [0], [1], [0, 0, 1, 1], [], []>} : vector<16x32xf32>, vector<32x32xf32>, vector<16x32xf32> -> vector<16x32xf32>
    %c0_37 = arith.constant 0 : index
    %c0_38 = arith.constant 0 : index
    %190 = vector.load %arg10[%c0_37, %c0_38] : memref<1x32xf32, #tpu.memory_space<vmem>>, vector<1x32xf32>
    %191 = vector.broadcast %190 : vector<1x32xf32> to vector<16x32xf32>
    %192 = arith.addf %189, %191 : vector<16x32xf32>
    %c0_39 = arith.constant 0 : index
    %c0_40 = arith.constant 0 : index
    %193 = vector.load %arg11[%c0_39, %c0_40] : memref<32x32xf32, #tpu.memory_space<vmem>>, vector<32x32xf32>
    %cst_41 = arith.constant dense<0.000000e+00> : vector<2x32xf32>
    %194 = tpu.matmul %145, %193, %cst_41 {dimension_numbers = #tpu.dot_dimension_numbers<[1], [0], [0], [1], [0, 0, 1, 1], [], []>} : vector<2x32xf32>, vector<32x32xf32>, vector<2x32xf32> -> vector<2x32xf32>
    %c0_42 = arith.constant 0 : index
    %c0_43 = arith.constant 0 : index
    %195 = vector.load %arg12[%c0_42, %c0_43] : memref<1x32xf32, #tpu.memory_space<vmem>>, vector<1x32xf32>
    %196 = vector.broadcast %195 : vector<1x32xf32> to vector<2x32xf32>
    %197 = arith.addf %194, %196 : vector<2x32xf32>
    %198 = vector.extract_strided_slice %192 {offsets = [0, 0], sizes = [2, 32], strides = [1, 1]} : vector<16x32xf32> to vector<2x32xf32>
    %199 = arith.mulf %198, %197 : vector<2x32xf32>
    %cst_44 = arith.constant dense<0.000000e+00> : vector<2xf32>
    %200 = vector.multi_reduction <add>, %199, %cst_44 [1] : vector<2x32xf32> to vector<2xf32>
    %201 = vector.shape_cast %200 : vector<2xf32> to vector<2x1xf32>
    %202 = vector.extract_strided_slice %192 {offsets = [2, 0], sizes = [2, 32], strides = [1, 1]} : vector<16x32xf32> to vector<2x32xf32>
    %203 = arith.mulf %202, %197 : vector<2x32xf32>
    %cst_45 = arith.constant dense<0.000000e+00> : vector<2xf32>
    %204 = vector.multi_reduction <add>, %203, %cst_45 [1] : vector<2x32xf32> to vector<2xf32>
    %205 = vector.shape_cast %204 : vector<2xf32> to vector<2x1xf32>
    %206 = vector.extract_strided_slice %192 {offsets = [4, 0], sizes = [2, 32], strides = [1, 1]} : vector<16x32xf32> to vector<2x32xf32>
    %207 = arith.mulf %206, %197 : vector<2x32xf32>
    %cst_46 = arith.constant dense<0.000000e+00> : vector<2xf32>
    %208 = vector.multi_reduction <add>, %207, %cst_46 [1] : vector<2x32xf32> to vector<2xf32>
    %209 = vector.shape_cast %208 : vector<2xf32> to vector<2x1xf32>
    %210 = vector.extract_strided_slice %192 {offsets = [6, 0], sizes = [2, 32], strides = [1, 1]} : vector<16x32xf32> to vector<2x32xf32>
    %211 = arith.mulf %210, %197 : vector<2x32xf32>
    %cst_47 = arith.constant dense<0.000000e+00> : vector<2xf32>
    %212 = vector.multi_reduction <add>, %211, %cst_47 [1] : vector<2x32xf32> to vector<2xf32>
    %213 = vector.shape_cast %212 : vector<2xf32> to vector<2x1xf32>
    %214 = vector.extract_strided_slice %192 {offsets = [8, 0], sizes = [2, 32], strides = [1, 1]} : vector<16x32xf32> to vector<2x32xf32>
    %215 = arith.mulf %214, %197 : vector<2x32xf32>
    %cst_48 = arith.constant dense<0.000000e+00> : vector<2xf32>
    %216 = vector.multi_reduction <add>, %215, %cst_48 [1] : vector<2x32xf32> to vector<2xf32>
    %217 = vector.shape_cast %216 : vector<2xf32> to vector<2x1xf32>
    %218 = vector.extract_strided_slice %192 {offsets = [10, 0], sizes = [2, 32], strides = [1, 1]} : vector<16x32xf32> to vector<2x32xf32>
    %219 = arith.mulf %218, %197 : vector<2x32xf32>
    %cst_49 = arith.constant dense<0.000000e+00> : vector<2xf32>
    %220 = vector.multi_reduction <add>, %219, %cst_49 [1] : vector<2x32xf32> to vector<2xf32>
    %221 = vector.shape_cast %220 : vector<2xf32> to vector<2x1xf32>
    %222 = vector.extract_strided_slice %192 {offsets = [12, 0], sizes = [2, 32], strides = [1, 1]} : vector<16x32xf32> to vector<2x32xf32>
    %223 = arith.mulf %222, %197 : vector<2x32xf32>
    %cst_50 = arith.constant dense<0.000000e+00> : vector<2xf32>
    %224 = vector.multi_reduction <add>, %223, %cst_50 [1] : vector<2x32xf32> to vector<2xf32>
    %225 = vector.shape_cast %224 : vector<2xf32> to vector<2x1xf32>
    %226 = vector.extract_strided_slice %192 {offsets = [14, 0], sizes = [2, 32], strides = [1, 1]} : vector<16x32xf32> to vector<2x32xf32>
    %227 = arith.mulf %226, %197 : vector<2x32xf32>
    %cst_51 = arith.constant dense<0.000000e+00> : vector<2xf32>
    %228 = vector.multi_reduction <add>, %227, %cst_51 [1] : vector<2x32xf32> to vector<2xf32>
    %229 = vector.shape_cast %228 : vector<2xf32> to vector<2x1xf32>
    %230 = arith.maximumf %201, %205 : vector<2x1xf32>
    %231 = arith.maximumf %230, %209 : vector<2x1xf32>
    %232 = arith.maximumf %231, %213 : vector<2x1xf32>
    %233 = arith.maximumf %232, %217 : vector<2x1xf32>
    %234 = arith.maximumf %233, %221 : vector<2x1xf32>
    %235 = arith.maximumf %234, %225 : vector<2x1xf32>
    %236 = arith.maximumf %235, %229 : vector<2x1xf32>
    %237 = arith.subf %201, %236 : vector<2x1xf32>
    %238 = math.exp %237 : vector<2x1xf32>
    %239 = arith.subf %205, %236 : vector<2x1xf32>
    %240 = math.exp %239 : vector<2x1xf32>
    %241 = arith.subf %209, %236 : vector<2x1xf32>
    %242 = math.exp %241 : vector<2x1xf32>
    %243 = arith.subf %213, %236 : vector<2x1xf32>
    %244 = math.exp %243 : vector<2x1xf32>
    %245 = arith.subf %217, %236 : vector<2x1xf32>
    %246 = math.exp %245 : vector<2x1xf32>
    %247 = arith.subf %221, %236 : vector<2x1xf32>
    %248 = math.exp %247 : vector<2x1xf32>
    %249 = arith.subf %225, %236 : vector<2x1xf32>
    %250 = math.exp %249 : vector<2x1xf32>
    %251 = arith.subf %229, %236 : vector<2x1xf32>
    %252 = math.exp %251 : vector<2x1xf32>
    %253 = arith.addf %238, %240 : vector<2x1xf32>
    %254 = arith.addf %253, %242 : vector<2x1xf32>
    %255 = arith.addf %254, %244 : vector<2x1xf32>
    %256 = arith.addf %255, %246 : vector<2x1xf32>
    %257 = arith.addf %256, %248 : vector<2x1xf32>
    %258 = arith.addf %257, %250 : vector<2x1xf32>
    %259 = arith.addf %258, %252 : vector<2x1xf32>
    %cst_52 = arith.constant 1.000000e+00 : f32
    %260 = vector.broadcast %cst_52 : f32 to vector<2x1xf32>
    %261 = arith.divf %260, %259 : vector<2x1xf32>
    %262 = arith.mulf %238, %261 : vector<2x1xf32>
    %263 = arith.mulf %240, %261 : vector<2x1xf32>
    %264 = arith.mulf %242, %261 : vector<2x1xf32>
    %265 = arith.mulf %244, %261 : vector<2x1xf32>
    %266 = arith.mulf %246, %261 : vector<2x1xf32>
    %267 = arith.mulf %248, %261 : vector<2x1xf32>
    %268 = arith.mulf %250, %261 : vector<2x1xf32>
    %269 = arith.mulf %252, %261 : vector<2x1xf32>
    %270 = vector.extract_strided_slice %192 {offsets = [0, 0], sizes = [2, 32], strides = [1, 1]} : vector<16x32xf32> to vector<2x32xf32>
    %271 = vector.broadcast %262 : vector<2x1xf32> to vector<2x32xf32>
    %272 = arith.mulf %271, %270 : vector<2x32xf32>
    %273 = vector.extract_strided_slice %192 {offsets = [2, 0], sizes = [2, 32], strides = [1, 1]} : vector<16x32xf32> to vector<2x32xf32>
    %274 = vector.broadcast %263 : vector<2x1xf32> to vector<2x32xf32>
    %275 = arith.mulf %274, %273 : vector<2x32xf32>
    %276 = arith.addf %272, %275 : vector<2x32xf32>
    %277 = vector.extract_strided_slice %192 {offsets = [4, 0], sizes = [2, 32], strides = [1, 1]} : vector<16x32xf32> to vector<2x32xf32>
    %278 = vector.broadcast %264 : vector<2x1xf32> to vector<2x32xf32>
    %279 = arith.mulf %278, %277 : vector<2x32xf32>
    %280 = vector.extract_strided_slice %192 {offsets = [6, 0], sizes = [2, 32], strides = [1, 1]} : vector<16x32xf32> to vector<2x32xf32>
    %281 = vector.broadcast %265 : vector<2x1xf32> to vector<2x32xf32>
    %282 = arith.mulf %281, %280 : vector<2x32xf32>
    %283 = arith.addf %279, %282 : vector<2x32xf32>
    %284 = vector.extract_strided_slice %192 {offsets = [8, 0], sizes = [2, 32], strides = [1, 1]} : vector<16x32xf32> to vector<2x32xf32>
    %285 = vector.broadcast %266 : vector<2x1xf32> to vector<2x32xf32>
    %286 = arith.mulf %285, %284 : vector<2x32xf32>
    %287 = vector.extract_strided_slice %192 {offsets = [10, 0], sizes = [2, 32], strides = [1, 1]} : vector<16x32xf32> to vector<2x32xf32>
    %288 = vector.broadcast %267 : vector<2x1xf32> to vector<2x32xf32>
    %289 = arith.mulf %288, %287 : vector<2x32xf32>
    %290 = arith.addf %286, %289 : vector<2x32xf32>
    %291 = vector.extract_strided_slice %192 {offsets = [12, 0], sizes = [2, 32], strides = [1, 1]} : vector<16x32xf32> to vector<2x32xf32>
    %292 = vector.broadcast %268 : vector<2x1xf32> to vector<2x32xf32>
    %293 = arith.mulf %292, %291 : vector<2x32xf32>
    %294 = vector.extract_strided_slice %192 {offsets = [14, 0], sizes = [2, 32], strides = [1, 1]} : vector<16x32xf32> to vector<2x32xf32>
    %295 = vector.broadcast %269 : vector<2x1xf32> to vector<2x32xf32>
    %296 = arith.mulf %295, %294 : vector<2x32xf32>
    %297 = arith.addf %293, %296 : vector<2x32xf32>
    %298 = tpu.concatenate %276, %283, %290, %297 in 0 : vector<2x32xf32>, vector<2x32xf32>, vector<2x32xf32>, vector<2x32xf32> -> vector<8x32xf32>
    %c0_53 = arith.constant 0 : index
    %c0_54 = arith.constant 0 : index
    %299 = vector.load %arg13[%c0_53, %c0_54] : memref<32x64xf32, #tpu.memory_space<vmem>>, vector<32x64xf32>
    %cst_55 = arith.constant dense<0.000000e+00> : vector<8x64xf32>
    %300 = tpu.matmul %298, %299, %cst_55 {dimension_numbers = #tpu.dot_dimension_numbers<[1], [0], [0], [1], [0, 0, 1, 1], [], []>} : vector<8x32xf32>, vector<32x64xf32>, vector<8x64xf32> -> vector<8x64xf32>
    %c0_56 = arith.constant 0 : index
    %c0_57 = arith.constant 0 : index
    %301 = vector.load %arg14[%c0_56, %c0_57] : memref<1x64xf32, #tpu.memory_space<vmem>>, vector<1x64xf32>
    %302 = vector.broadcast %301 : vector<1x64xf32> to vector<8x64xf32>
    %303 = arith.addf %300, %302 : vector<8x64xf32>
    %c0_58 = arith.constant 0 : index
    %c0_59 = arith.constant 0 : index
    %304 = vector.load %arg15[%c0_58, %c0_59] : memref<64x8xf32, #tpu.memory_space<vmem>>, vector<64x8xf32>
    %cst_60 = arith.constant dense<0.000000e+00> : vector<8x8xf32>
    %305 = tpu.matmul %303, %304, %cst_60 {dimension_numbers = #tpu.dot_dimension_numbers<[1], [0], [0], [1], [0, 0, 1, 1], [], []>} : vector<8x64xf32>, vector<64x8xf32>, vector<8x8xf32> -> vector<8x8xf32>
    %c0_61 = arith.constant 0 : index
    %c0_62 = arith.constant 0 : index
    %306 = vector.load %arg16[%c0_61, %c0_62] : memref<1x8xf32, #tpu.memory_space<vmem>>, vector<1x8xf32>
    %307 = vector.broadcast %306 : vector<1x8xf32> to vector<8x8xf32>
    %308 = arith.addf %305, %307 : vector<8x8xf32>
    %c0_63 = arith.constant 0 : index
    %c0_64 = arith.constant 0 : index
    %309 = vector.load %arg17[%c0_63, %c0_64] : memref<8x8xf32, #tpu.memory_space<vmem>>, vector<8x8xf32>
    tpu.vector_store %arg17[%c0_63, %c0_64], %308 {strides = array<i32>} : memref<8x8xf32, #tpu.memory_space<vmem>>, vector<8x8xf32>,
    return
  }
}

</mosaic_0001>

<llo_original>
// kernel: node_locator_forward.1
$region0: #{node_locator_forward.1}
  #allocation0 [shape = 'u32[]', space=smem, size = 0x4, offset = 0x4, fixed_abs, tag = 'smem constant byte address 0x4 - core index']
  #allocation1 [shape = 'u32[144,128]{1,0:T(1,128)}', space=vmem, size = 0x12000, scoped, tag = 'internal scratch']
  %s0 = inlined_call_operand.vmem [shape: f32[16,32], index: 0, kind: input, shape index: {}]
  %s1 = inlined_call_operand.vmem [shape: f32[12,32], index: 1, kind: input, shape index: {}]
  %s2 = inlined_call_operand.vmem [shape: f32[32,128], index: 2, kind: input, shape index: {}]
  %s3 = inlined_call_operand.vmem [shape: f32[1,128], index: 3, kind: input, shape index: {}]
  %s4 = inlined_call_operand.vmem [shape: f32[32,128], index: 4, kind: input, shape index: {}]
  %s5 = inlined_call_operand.vmem [shape: f32[1,128], index: 5, kind: input, shape index: {}]
  %s6 = inlined_call_operand.vmem [shape: f32[64,256], index: 6, kind: input, shape index: {}]
  %s7 = inlined_call_operand.vmem [shape: f32[32,128], index: 7, kind: input, shape index: {}]
  %s8 = inlined_call_operand.vmem [shape: f32[32,128], index: 8, kind: input, shape index: {}]
  %s9 = inlined_call_operand.vmem [shape: f32[32,32], index: 9, kind: input, shape index: {}]
  %s10 = inlined_call_operand.vmem [shape: f32[1,32], index: 10, kind: input, shape index: {}]
  %s11 = inlined_call_operand.vmem [shape: f32[32,32], index: 11, kind: input, shape index: {}]
  %s12 = inlined_call_operand.vmem [shape: f32[1,32], index: 12, kind: input, shape index: {}]
  %s13 = inlined_call_operand.vmem [shape: f32[32,64], index: 13, kind: input, shape index: {}]
  %s14 = inlined_call_operand.vmem [shape: f32[1,64], index: 14, kind: input, shape index: {}]
  %s15 = inlined_call_operand.vmem [shape: f32[64,8], index: 15, kind: input, shape index: {}]
  %s16 = inlined_call_operand.vmem [shape: f32[1,8], index: 16, kind: input, shape index: {}]
  %s17 = inlined_call_operand.vmem [shape: f32[8,8], index: 17, kind: output, shape index: {}]
  %s18 = sld [smem:[#allocation0]]
  $region78: #{node_locator_forward.1} parent=0
    _
  %s20 = ssub.s32 1, %s18
  %s21 = scalar_select 0, %s20, %s18
  // Predicated region
  $region2: #{node_locator_forward.1} parent=0 // pred_check
    _
  $region3: #{node_locator_forward.1} parent=0 // pred_check_branch
    %23 = sbr.rel (0) target = $region5
  $region4: #{node_locator_forward.1} parent=0 // pred_region
    _
  $region5: #{node_locator_forward.1} parent=0 // pred_fallthru
    _
  // Predicated region
  $region6: #{node_locator_forward.1} parent=0 // pred_check
    _
  $region7: #{node_locator_forward.1} parent=0 // pred_check_branch
    %25 = sbr.rel (0) target = $region9
  $region8: #{node_locator_forward.1} parent=0 // pred_region
    _
  $region9: #{node_locator_forward.1} parent=0 // pred_fallthru
    _
  // Predicated region
  $region10: #{node_locator_forward.1} parent=0 // pred_check
    _
  $region11: #{node_locator_forward.1} parent=0 // pred_check_branch
    %27 = sbr.rel (0) target = $region13
  $region12: #{node_locator_forward.1} parent=0 // pred_region
    _
  $region13: #{node_locator_forward.1} parent=0 // pred_fallthru
    _
  // Predicated region
  $region14: #{node_locator_forward.1} parent=0 // pred_check
    _
  $region15: #{node_locator_forward.1} parent=0 // pred_check_branch
    %29 = sbr.rel (0) target = $region17
  $region16: #{node_locator_forward.1} parent=0 // pred_region
    _
  $region17: #{node_locator_forward.1} parent=0 // pred_fallthru
    _
  // Predicated region
  $region18: #{node_locator_forward.1} parent=0 // pred_check
    _
  $region19: #{node_locator_forward.1} parent=0 // pred_check_branch
    %31 = sbr.rel (0) target = $region21
  $region20: #{node_locator_forward.1} parent=0 // pred_region
    _
  $region21: #{node_locator_forward.1} parent=0 // pred_fallthru
    _
  // Predicated region
  $region22: #{node_locator_forward.1} parent=0 // pred_check
    _
  $region23: #{node_locator_forward.1} parent=0 // pred_check_branch
    %33 = sbr.rel (0) target = $region25
  $region24: #{node_locator_forward.1} parent=0 // pred_region
    _
  $region25: #{node_locator_forward.1} parent=0 // pred_fallthru
    _
  // Predicated region
  $region26: #{node_locator_forward.1} parent=0 // pred_check
    _
  $region27: #{node_locator_forward.1} parent=0 // pred_check_branch
    %35 = sbr.rel (0) target = $region29
  $region28: #{node_locator_forward.1} parent=0 // pred_region
    _
  $region29: #{node_locator_forward.1} parent=0 // pred_fallthru
    _
  // Predicated region
  $region30: #{node_locator_forward.1} parent=0 // pred_check
    _
  $region31: #{node_locator_forward.1} parent=0 // pred_check_branch
    %37 = sbr.rel (0) target = $region33
  $region32: #{node_locator_forward.1} parent=0 // pred_region
    _
  $region33: #{node_locator_forward.1} parent=0 // pred_fallthru
    _
  // Predicated region
  $region34: #{node_locator_forward.1} parent=0 // pred_check
    _
  $region35: #{node_locator_forward.1} parent=0 // pred_check_branch
    %39 = sbr.rel (0) target = $region37
  $region36: #{node_locator_forward.1} parent=0 // pred_region
    _
  $region37: #{node_locator_forward.1} parent=0 // pred_fallthru
    _
  // Predicated region
  $region38: #{node_locator_forward.1} parent=0 // pred_check
    _
  $region39: #{node_locator_forward.1} parent=0 // pred_check_branch
    %41 = sbr.rel (0) target = $region41
  $region40: #{node_locator_forward.1} parent=0 // pred_region
    _
  $region41: #{node_locator_forward.1} parent=0 // pred_fallthru
    _
  // Predicated region
  $region42: #{node_locator_forward.1} parent=0 // pred_check
    _
  $region43: #{node_locator_forward.1} parent=0 // pred_check_branch
    %43 = sbr.rel (0) target = $region45
  $region44: #{node_locator_forward.1} parent=0 // pred_region
    _
  $region45: #{node_locator_forward.1} parent=0 // pred_fallthru
    _
  // Predicated region
  $region46: #{node_locator_forward.1} parent=0 // pred_check
    _
  $region47: #{node_locator_forward.1} parent=0 // pred_check_branch
    %45 = sbr.rel (0) target = $region49
  $region48: #{node_locator_forward.1} parent=0 // pred_region
    _
  $region49: #{node_locator_forward.1} parent=0 // pred_fallthru
    _
  // Predicated region
  $region50: #{node_locator_forward.1} parent=0 // pred_check
    _
  $region51: #{node_locator_forward.1} parent=0 // pred_check_branch
    %47 = sbr.rel (0) target = $region53
  $region52: #{node_locator_forward.1} parent=0 // pred_region
    _
  $region53: #{node_locator_forward.1} parent=0 // pred_fallthru
    _
  // Predicated region
  $region54: #{node_locator_forward.1} parent=0 // pred_check
    _
  $region55: #{node_locator_forward.1} parent=0 // pred_check_branch
    %49 = sbr.rel (0) target = $region57
  $region56: #{node_locator_forward.1} parent=0 // pred_region
    _
  $region57: #{node_locator_forward.1} parent=0 // pred_fallthru
    _
  // Predicated region
  $region58: #{node_locator_forward.1} parent=0 // pred_check
    _
  $region59: #{node_locator_forward.1} parent=0 // pred_check_branch
    %51 = sbr.rel (0) target = $region61
  $region60: #{node_locator_forward.1} parent=0 // pred_region
    _
  $region61: #{node_locator_forward.1} parent=0 // pred_fallthru
    _
  // Predicated region
  $region62: #{node_locator_forward.1} parent=0 // pred_check
    _
  $region63: #{node_locator_forward.1} parent=0 // pred_check_branch
    %53 = sbr.rel (0) target = $region65
  $region64: #{node_locator_forward.1} parent=0 // pred_region
    _
  $region65: #{node_locator_forward.1} parent=0 // pred_fallthru
    _
  // Predicated region
  $region66: #{node_locator_forward.1} parent=0 // pred_check
    _
  $region67: #{node_locator_forward.1} parent=0 // pred_check_branch
    %55 = sbr.rel (0) target = $region69
  $region68: #{node_locator_forward.1} parent=0 // pred_region
    _
  $region69: #{node_locator_forward.1} parent=0 // pred_fallthru
    _
  %v56 = vld [vmem:[%s0] sm:$0xff]
  %v57 = vld [vmem:[%s0 + $0x8] sm:$0xff]
  %v58 = vld [vmem:[%s2] sm:$0xff]
  %v59 = vld [vmem:[%s2 + $0x8] sm:$0xff]
  %v60 = vld [vmem:[%s2 + $0x10] sm:$0xff]
  %v61 = vld [vmem:[%s2 + $0x18] sm:$0xff]
  %v62 = vld [vmem:[%s3] sm:$0x1]
  %v64 = vlaneseq
  %v65 = vshrl.u32 %v64, 7
  %v66 = vsub.s32 0, %v65
  %v67 = vrot.slane %v62, %v66
  %vm69 = vcmask 261120
  %v71 = vsel %vm69, %v56, 0
  %v74 = vsel %vm69, %v57, 0
  %76 = vmatprep.subr.mxu0 0.0
  %77 = vmatpush1.msra.mxu0 %v58
  %78 = vmatprep.subr.mxu0 0.0
  %79 = vmatpush1.msra.mxu0 %v59
  %80 = vmatprep.subr.mxu0 0.0
  %81 = vmatpush1.msra.mxu0 %v60
  %82 = vmatprep.subr.mxu0 0.0
  %83 = vmatpush1.msra.mxu0 %v61
  %84 = vmatprep.subr.mxu0 0.0
  %85 = vmatpush1.msra.mxu0 0.0
  %86 = vmatprep.subr.mxu0 0.0
  %87 = vmatpush1.msra.mxu0 0.0
  %88 = vmatprep.subr.mxu0 0.0
  %89 = vmatpush1.msra.mxu0 0.0
  %90 = vmatprep.subr.mxu0 0.0
  %91 = vmatpush1.msra.mxu0 0.0
  %92 = vmatprep.subr.mxu0 0.0
  %93 = vmatpush1.msra.mxu0 0.0
  %94 = vmatprep.subr.mxu0 0.0
  %95 = vmatpush1.msra.mxu0 0.0
  %96 = vmatprep.subr.mxu0 0.0
  %97 = vmatpush1.msra.mxu0 0.0
  %98 = vmatprep.subr.mxu0 0.0
  %99 = vmatpush1.msra.mxu0 0.0
  %100 = vmatprep.subr.mxu0 0.0
  %101 = vmatpush1.msra.mxu0 0.0
  %102 = vmatprep.subr.mxu0 0.0
  %103 = vmatpush1.msra.mxu0 0.0
  %104 = vmatprep.subr.mxu0 0.0
  %105 = vmatpush1.msra.mxu0 0.0
  %106 = vmatprep.subr.mxu0 0.0
  %107 = vmatpush1.msra.mxu0 0.0
  %108 = vmatprep.subr.mxu0 0.0
  %109 = vmatpush1.msra.mxu0 0.0
  %110 = vmatprep.subr.mxu0 0.0
  %111 = vmatpush1.msra.mxu0 0.0
  %112 = vmatprep.subr.mxu0 0.0
  %113 = vmatpush1.msra.mxu0 0.0
  %114 = vmatprep.subr.mxu0 0.0
  %115 = vmatpush1.msra.mxu0 0.0
  %116 = vmatprep.subr.mxu0 0.0
  %117 = vmatpush1.msra.mxu0 0.0
  %118 = vmatprep.subr.mxu0 0.0
  %119 = vmatpush1.msra.mxu0 0.0
  %120 = vmatprep.subr.mxu0 0.0
  %121 = vmatpush1.msra.mxu0 0.0
  %122 = vmatprep.subr.mxu0 0.0
  %123 = vmatpush1.msra.mxu0 0.0
  %124 = vmatprep.subr.mxu0 0.0
  %125 = vmatpush1.msra.mxu0 0.0
  %126 = vmatprep.subr.mxu0 0.0
  %127 = vmatpush1.msra.mxu0 0.0
  %128 = vmatprep.subr.mxu0 0.0
  %129 = vmatpush1.msra.mxu0 0.0
  %130 = vmatprep.subr.mxu0 0.0
  %131 = vmatpush1.msra.mxu0 0.0
  %132 = vmatprep.subr.mxu0 0.0
  %133 = vmatpush1.msra.mxu0 0.0
  %134 = vmatprep.subr.mxu0 0.0
  %135 = vmatpush1.msra.mxu0 0.0
  %136 = vmatprep.subr.mxu0 0.0
  %137 = vmatpush1.msra.mxu0 0.0
  %138 = vmatprep.subr.mxu0 0.0
  %139 = vmatpush1.msra.mxu0 0.0
  %140 = vmatprep.mubr.f32.mxu0 0.0
  %141 = vmatmul.mubr.f32.gmra.mrb[0].mxu0 %v71
  %v142 = vpop.f32.mrb[0].mxu0
  %v143 = vadd.f32 %v67, %v142
  %v144 = vpop.f32.mrb[0].mxu0
  %145 = vmatprep.mubr.f32.mxu0 0.0
  %146 = vmatmul.mubr.f32.gmra.mrb[0].mxu0 %v74
  %v147 = vpop.f32.mrb[0].mxu0
  %v148 = vadd.f32 %v67, %v147
  %v149 = vpop.f32.mrb[0].mxu0
  %150 = vdwg.mxu0
  %v151 = vld [vmem:[%s1] sm:$0xff]
  %v152 = vld [vmem:[%s1 + $0x8] sm:$0xf]
  %v153 = vld [vmem:[%s4] sm:$0xff]
  %v154 = vld [vmem:[%s4 + $0x8] sm:$0xff]
  %v155 = vld [vmem:[%s4 + $0x10] sm:$0xff]
  %v156 = vld [vmem:[%s4 + $0x18] sm:$0xff]
  %v157 = vld [vmem:[%s5] sm:$0x1]
  %v159 = vlaneseq
  %v160 = vshrl.u32 %v159, 7
  %v161 = vsub.s32 0, %v160
  %v162 = vrot.slane %v157, %v161
  %v165 = vsel %vm69, %v151, 0
  %v168 = vsel %vm69, %v152, 0
  %170 = vmatprep.subr.mxu0 0.0
  %171 = vmatpush1.msra.mxu0 %v153
  %172 = vmatprep.subr.mxu0 0.0
  %173 = vmatpush1.msra.mxu0 %v154
  %174 = vmatprep.subr.mxu0 0.0
  %175 = vmatpush1.msra.mxu0 %v155
  %176 = vmatprep.subr.mxu0 0.0
  %177 = vmatpush1.msra.mxu0 %v156
  %178 = vmatprep.subr.mxu0 0.0
  %179 = vmatpush1.msra.mxu0 0.0
  %180 = vmatprep.subr.mxu0 0.0
  %181 = vmatpush1.msra.mxu0 0.0
  %182 = vmatprep.subr.mxu0 0.0
  %183 = vmatpush1.msra.mxu0 0.0
  %184 = vmatprep.subr.mxu0 0.0
  %185 = vmatpush1.msra.mxu0 0.0
  %186 = vmatprep.subr.mxu0 0.0
  %187 = vmatpush1.msra.mxu0 0.0
  %188 = vmatprep.subr.mxu0 0.0
  %189 = vmatpush1.msra.mxu0 0.0
  %190 = vmatprep.subr.mxu0 0.0
  %191 = vmatpush1.msra.mxu0 0.0
  %192 = vmatprep.subr.mxu0 0.0
  %193 = vmatpush1.msra.mxu0 0.0
  %194 = vmatprep.subr.mxu0 0.0
  %195 = vmatpush1.msra.mxu0 0.0
  %196 = vmatprep.subr.mxu0 0.0
  %197 = vmatpush1.msra.mxu0 0.0
  %198 = vmatprep.subr.mxu0 0.0
  %199 = vmatpush1.msra.mxu0 0.0
  %200 = vmatprep.subr.mxu0 0.0
  %201 = vmatpush1.msra.mxu0 0.0
  %202 = vmatprep.subr.mxu0 0.0
  %203 = vmatpush1.msra.mxu0 0.0
  %204 = vmatprep.subr.mxu0 0.0
  %205 = vmatpush1.msra.mxu0 0.0
  %206 = vmatprep.subr.mxu0 0.0
  %207 = vmatpush1.msra.mxu0 0.0
  %208 = vmatprep.subr.mxu0 0.0
  %209 = vmatpush1.msra.mxu0 0.0
  %210 = vmatprep.subr.mxu0 0.0
  %211 = vmatpush1.msra.mxu0 0.0
  %212 = vmatprep.subr.mxu0 0.0
  %213 = vmatpush1.msra.mxu0 0.0
  %214 = vmatprep.subr.mxu0 0.0
  %215 = vmatpush1.msra.mxu0 0.0
  %216 = vmatprep.subr.mxu0 0.0
  %217 = vmatpush1.msra.mxu0 0.0
  %218 = vmatprep.subr.mxu0 0.0
  %219 = vmatpush1.msra.mxu0 0.0
  %220 = vmatprep.subr.mxu0 0.0
  %221 = vmatpush1.msra.mxu0 0.0
  %222 = vmatprep.subr.mxu0 0.0
  %223 = vmatpush1.msra.mxu0 0.0
  %224 = vmatprep.subr.mxu0 0.0
  %225 = vmatpush1.msra.mxu0 0.0
  %226 = vmatprep.subr.mxu0 0.0
  %227 = vmatpush1.msra.mxu0 0.0
  %228 = vmatprep.subr.mxu0 0.0
  %229 = vmatpush1.msra.mxu0 0.0
  %230 = vmatprep.subr.mxu0 0.0
  %231 = vmatpush1.msra.mxu0 0.0
  %232 = vmatprep.subr.mxu0 0.0
  %233 = vmatpush1.msra.mxu0 0.0
  %234 = vmatprep.mubr.f32.mxu0 0.0
  %235 = vmatmul.mubr.f32.gmra.mrb[0].mxu0 %v165
  %v236 = vpop.f32.mrb[0].mxu0
  %v237 = vadd.f32 %v162, %v236
  %v238 = vpop.f32.mrb[0].mxu0
  %239 = vmatprep.mubr.f32.mxu0 0.0
  %240 = vmatmul.mubr.f32.gmra.mrb[0].mxu0 %v168
  %v241 = vpop.f32.mrb[0].mxu0
  %v242 = vadd.f32 %v162, %v241
  %v243 = vpop.f32.mrb[0].mxu0
  %244 = vdwg.mxu0
  %247 = vrot.lane.b32.xlu0 %v237, 32
  %v248 = vpop.permute.xlu0 %247
  %249 = vrot.lane.b32.xlu0 %v242, 32
  %v250 = vpop.permute.xlu0 %249
  %255 = vrot.lane.b32.xlu0 %v143, 32
  %v256 = vpop.permute.xlu0 %255
  %257 = vrot.lane.b32.xlu0 %v148, 32
  %v258 = vpop.permute.xlu0 %257
  %261 = vrot.lane.b32.xlu0 %v237, 64
  %v262 = vpop.permute.xlu0 %261
  %263 = vrot.lane.b32.xlu0 %v242, 64
  %v264 = vpop.permute.xlu0 %263
  %267 = vrot.lane.b32.xlu0 %v143, 64
  %v268 = vpop.permute.xlu0 %267
  %269 = vrot.lane.b32.xlu0 %v148, 64
  %v270 = vpop.permute.xlu0 %269
  %273 = vrot.lane.b32.xlu0 %v237, 96
  %v274 = vpop.permute.xlu0 %273
  %275 = vrot.lane.b32.xlu0 %v242, 96
  %v276 = vpop.permute.xlu0 %275
  %279 = vrot.lane.b32.xlu0 %v143, 96
  %v280 = vpop.permute.xlu0 %279
  %281 = vrot.lane.b32.xlu0 %v148, 96
  %v282 = vpop.permute.xlu0 %281
  %v285 = vsel %vm69, %v143, %v248
  %v286 = vsel %vm69, %v148, %v250
  %vm287 = vcmask 523264
  %v288 = vsel %vm287, %v285, %v256
  %v289 = vsel %vm287, %v286, %v258
  %vm290 = vcmask 785408
  %v291 = vsel %vm290, %v288, %v262
  %v292 = vsel %vm290, %v289, %v264
  %v293 = vsel %vm69, %v268, %v274
  %v294 = vsel %vm69, %v270, %v276
  %v295 = vsel %vm287, %v293, %v280
  %v296 = vsel %vm287, %v294, %v282
  %v297 = vsel %vm290, %v295, %v237
  %v298 = vsel %vm290, %v296, %v242
  %v299 = vld [vmem:[%s6] sm:$0xff]
  %v300 = vld [vmem:[%s6 + $0x8] sm:$0xff]
  %v301 = vld [vmem:[%s6 + $0x10] sm:$0xff]
  %v302 = vld [vmem:[%s6 + $0x18] sm:$0xff]
  %v303 = vld [vmem:[%s6 + $0x20] sm:$0xff]
  %v304 = vld [vmem:[%s6 + $0x28] sm:$0xff]
  %v305 = vld [vmem:[%s6 + $0x30] sm:$0xff]
  %v306 = vld [vmem:[%s6 + $0x38] sm:$0xff]
  %v307 = vld [vmem:[%s6 + $0x40] sm:$0xff]
  %v308 = vld [vmem:[%s6 + $0x48] sm:$0xff]
  %v309 = vld [vmem:[%s6 + $0x50] sm:$0xff]
  %v310 = vld [vmem:[%s6 + $0x58] sm:$0xff]
  %v311 = vld [vmem:[%s6 + $0x60] sm:$0xff]
  %v312 = vld [vmem:[%s6 + $0x68] sm:$0xff]
  %v313 = vld [vmem:[%s6 + $0x70] sm:$0xff]
  %v314 = vld [vmem:[%s6 + $0x78] sm:$0xff]
  %v316 = vsel %vm287, 0.0, 0
  %318 = vmatprep.subr.mxu0 %v300
  %319 = vmatpush1.msra.mxu0 %v299
  %320 = vmatprep.subr.mxu0 %v302
  %321 = vmatpush1.msra.mxu0 %v301
  %322 = vmatprep.subr.mxu0 %v304
  %323 = vmatpush1.msra.mxu0 %v303
  %324 = vmatprep.subr.mxu0 %v306
  %325 = vmatpush1.msra.mxu0 %v305
  %326 = vmatprep.subr.mxu0 %v308
  %327 = vmatpush1.msra.mxu0 %v307
  %328 = vmatprep.subr.mxu0 %v310
  %329 = vmatpush1.msra.mxu0 %v309
  %330 = vmatprep.subr.mxu0 %v312
  %331 = vmatpush1.msra.mxu0 %v311
  %332 = vmatprep.subr.mxu0 %v314
  %333 = vmatpush1.msra.mxu0 %v313
  %334 = vmatprep.subr.mxu0 0.0
  %335 = vmatpush1.msra.mxu0 0.0
  %336 = vmatprep.subr.mxu0 0.0
  %337 = vmatpush1.msra.mxu0 0.0
  %338 = vmatprep.subr.mxu0 0.0
  %339 = vmatpush1.msra.mxu0 0.0
  %340 = vmatprep.subr.mxu0 0.0
  %341 = vmatpush1.msra.mxu0 0.0
  %342 = vmatprep.subr.mxu0 0.0
  %343 = vmatpush1.msra.mxu0 0.0
  %344 = vmatprep.subr.mxu0 0.0
  %345 = vmatpush1.msra.mxu0 0.0
  %346 = vmatprep.subr.mxu0 0.0
  %347 = vmatpush1.msra.mxu0 0.0
  %348 = vmatprep.subr.mxu0 0.0
  %349 = vmatpush1.msra.mxu0 0.0
  %350 = vmatprep.subr.mxu0 0.0
  %351 = vmatpush1.msra.mxu0 0.0
  %352 = vmatprep.subr.mxu0 0.0
  %353 = vmatpush1.msra.mxu0 0.0
  %354 = vmatprep.subr.mxu0 0.0
  %355 = vmatpush1.msra.mxu0 0.0
  %356 = vmatprep.subr.mxu0 0.0
  %357 = vmatpush1.msra.mxu0 0.0
  %358 = vmatprep.subr.mxu0 0.0
  %359 = vmatpush1.msra.mxu0 0.0
  %360 = vmatprep.subr.mxu0 0.0
  %361 = vmatpush1.msra.mxu0 0.0
  %362 = vmatprep.subr.mxu0 0.0
  %363 = vmatpush1.msra.mxu0 0.0
  %364 = vmatprep.subr.mxu0 0.0
  %365 = vmatpush1.msra.mxu0 0.0
  %366 = vmatprep.subr.mxu0 0.0
  %367 = vmatpush1.msra.mxu0 0.0
  %368 = vmatprep.subr.mxu0 0.0
  %369 = vmatpush1.msra.mxu0 0.0
  %370 = vmatprep.subr.mxu0 0.0
  %371 = vmatpush1.msra.mxu0 0.0
  %372 = vmatprep.subr.mxu0 0.0
  %373 = vmatpush1.msra.mxu0 0.0
  %374 = vmatprep.subr.mxu0 0.0
  %375 = vmatpush1.msra.mxu0 0.0
  %376 = vmatprep.subr.mxu0 0.0
  %377 = vmatpush1.msra.mxu0 0.0
  %378 = vmatprep.subr.mxu0 0.0
  %379 = vmatpush1.msra.mxu0 0.0
  %380 = vmatprep.subr.mxu0 0.0
  %381 = vmatpush1.msra.mxu0 0.0
  %382 = vmatprep.mubr.f32.mxu0 0.0
  %383 = vmatmul.mubr.f32.gmra.mrb[0].mxu0 %v316
  %v384 = vpop.f32.mrb[0].mxu0
  %v385 = vadd.f32 0.0, %v384
  %v386 = vpop.f32.mrb[0].mxu0
  %v387 = vadd.f32 0.0, %v386
  %388 = vdwg.mxu0
  %v389 = vadd.f32 %v291, %v385
  %v390 = vadd.f32 %v297, %v387
  %v391 = vxor.u32 %v389, 2147483648
  %v392 = vxor.u32 %v390, 2147483648
  %v393 = vmul.f32 %v391, 1.442695
  %v394 = vpow.pop %v393
  %v395 = vmul.f32 %v392, 1.442695
  %v396 = vpow.pop %v395
  %v397 = vadd.f32 %v394, 1.0
  %v398 = vadd.f32 %v396, 1.0
  %v399 = vrcp.pop %v397
  %v400 = vmul.f32 1.0, %v399
  %v401 = vrcp.pop %v398
  %v402 = vmul.f32 1.0, %v401
  %v403 = vtanh.pop %v390
  %v404 = vmul.f32 %v400, 0.0
  %406 = vrot.lane.b32.xlu0 %v403, 64
  %v407 = vpop.permute.xlu0 %406
  %v409 = vmul.f32 %v400, %v407
  %411 = vrot.lane.b32.xlu0 %v409, 64
  %v412 = vpop.permute.xlu0 %411
  %v414 = vadd.f32 %v404, %v412
  %v415 = vtanh.pop %v414
  %417 = vrot.lane.b32.xlu0 %v415, 64
  %v418 = vpop.permute.xlu0 %417
  %v420 = vmul.f32 %v402, %v418
  %v422 = vsel %vm287, %v420, 0
  %424 = vmatprep.subr.mxu0 %v300
  %425 = vmatpush1.msra.mxu0 %v299
  %426 = vmatprep.subr.mxu0 %v302
  %427 = vmatpush1.msra.mxu0 %v301
  %428 = vmatprep.subr.mxu0 %v304
  %429 = vmatpush1.msra.mxu0 %v303
  %430 = vmatprep.subr.mxu0 %v306
  %431 = vmatpush1.msra.mxu0 %v305
  %432 = vmatprep.subr.mxu0 %v308
  %433 = vmatpush1.msra.mxu0 %v307
  %434 = vmatprep.subr.mxu0 %v310
  %435 = vmatpush1.msra.mxu0 %v309
  %436 = vmatprep.subr.mxu0 %v312
  %437 = vmatpush1.msra.mxu0 %v311
  %438 = vmatprep.subr.mxu0 %v314
  %439 = vmatpush1.msra.mxu0 %v313
  %440 = vmatprep.subr.mxu0 0.0
  %441 = vmatpush1.msra.mxu0 0.0
  %442 = vmatprep.subr.mxu0 0.0
  %443 = vmatpush1.msra.mxu0 0.0
  %444 = vmatprep.subr.mxu0 0.0
  %445 = vmatpush1.msra.mxu0 0.0
  %446 = vmatprep.subr.mxu0 0.0
  %447 = vmatpush1.msra.mxu0 0.0
  %448 = vmatprep.subr.mxu0 0.0
  %449 = vmatpush1.msra.mxu0 0.0
  %450 = vmatprep.subr.mxu0 0.0
  %451 = vmatpush1.msra.mxu0 0.0
  %452 = vmatprep.subr.mxu0 0.0
  %453 = vmatpush1.msra.mxu0 0.0
  %454 = vmatprep.subr.mxu0 0.0
  %455 = vmatpush1.msra.mxu0 0.0
  %456 = vmatprep.subr.mxu0 0.0
  %457 = vmatpush1.msra.mxu0 0.0
  %458 = vmatprep.subr.mxu0 0.0
  %459 = vmatpush1.msra.mxu0 0.0
  %460 = vmatprep.subr.mxu0 0.0
  %461 = vmatpush1.msra.mxu0 0.0
  %462 = vmatprep.subr.mxu0 0.0
  %463 = vmatpush1.msra.mxu0 0.0
  %464 = vmatprep.subr.mxu0 0.0
  %465 = vmatpush1.msra.mxu0 0.0
  %466 = vmatprep.subr.mxu0 0.0
  %467 = vmatpush1.msra.mxu0 0.0
  %468 = vmatprep.subr.mxu0 0.0
  %469 = vmatpush1.msra.mxu0 0.0
  %470 = vmatprep.subr.mxu0 0.0
  %471 = vmatpush1.msra.mxu0 0.0
  %472 = vmatprep.subr.mxu0 0.0
  %473 = vmatpush1.msra.mxu0 0.0
  %474 = vmatprep.subr.mxu0 0.0
  %475 = vmatpush1.msra.mxu0 0.0
  %476 = vmatprep.subr.mxu0 0.0
  %477 = vmatpush1.msra.mxu0 0.0
  %478 = vmatprep.subr.mxu0 0.0
  %479 = vmatpush1.msra.mxu0 0.0
  %480 = vmatprep.subr.mxu0 0.0
  %481 = vmatpush1.msra.mxu0 0.0
  %482 = vmatprep.subr.mxu0 0.0
  %483 = vmatpush1.msra.mxu0 0.0
  %484 = vmatprep.subr.mxu0 0.0
  %485 = vmatpush1.msra.mxu0 0.0
  %486 = vmatprep.subr.mxu0 0.0
  %487 = vmatpush1.msra.mxu0 0.0
  %488 = vmatprep.mubr.f32.mxu0 0.0
  %489 = vmatmul.mubr.f32.gmra.mrb[0].mxu0 %v422
  %v490 = vpop.f32.mrb[0].mxu0
  %v491 = vadd.f32 0.0, %v490
  %v492 = vpop.f32.mrb[0].mxu0
  %v493 = vadd.f32 0.0, %v492
  %494 = vdwg.mxu0
  %v497 = vrot.slane %v491, 6
  %v498 = vrot.slane %v493, 6
  %v501 = vadd.f32 %v291, %v497
  %v502 = vadd.f32 %v297, %v498
  %v503 = vxor.u32 %v501, 2147483648
  %v504 = vxor.u32 %v502, 2147483648
  %v505 = vmul.f32 %v503, 1.442695
  %v506 = vpow.pop %v505
  %v507 = vmul.f32 %v504, 1.442695
  %v508 = vpow.pop %v507
  %v509 = vadd.f32 %v506, 1.0
  %v510 = vadd.f32 %v508, 1.0
  %v511 = vrcp.pop %v509
  %v512 = vmul.f32 1.0, %v511
  %v513 = vrcp.pop %v510
  %v514 = vmul.f32 1.0, %v513
  %v515 = vtanh.pop %v502
  %v517 = vrot.slane %v414, 6
  %v519 = vmul.f32 %v512, %v517
  %521 = vrot.lane.b32.xlu0 %v515, 64
  %v522 = vpop.permute.xlu0 %521
  %v524 = vmul.f32 %v512, %v522
  %526 = vrot.lane.b32.xlu0 %v524, 64
  %v527 = vpop.permute.xlu0 %526
  %v529 = vadd.f32 %v519, %v527
  %v530 = vtanh.pop %v529
  %532 = vrot.lane.b32.xlu0 %v530, 64
  %v533 = vpop.permute.xlu0 %532
  %v535 = vmul.f32 %v514, %v533
  %v537 = vrot.slane %v535, 2
  %v538 = vsel %vm287, %v537, 0
  %540 = vmatprep.subr.mxu0 %v300
  %541 = vmatpush1.msra.mxu0 %v299
  %542 = vmatprep.subr.mxu0 %v302
  %543 = vmatpush1.msra.mxu0 %v301
  %544 = vmatprep.subr.mxu0 %v304
  %545 = vmatpush1.msra.mxu0 %v303
  %546 = vmatprep.subr.mxu0 %v306
  %547 = vmatpush1.msra.mxu0 %v305
  %548 = vmatprep.subr.mxu0 %v308
  %549 = vmatpush1.msra.mxu0 %v307
  %550 = vmatprep.subr.mxu0 %v310
  %551 = vmatpush1.msra.mxu0 %v309
  %552 = vmatprep.subr.mxu0 %v312
  %553 = vmatpush1.msra.mxu0 %v311
  %554 = vmatprep.subr.mxu0 %v314
  %555 = vmatpush1.msra.mxu0 %v313
  %556 = vmatprep.subr.mxu0 0.0
  %557 = vmatpush1.msra.mxu0 0.0
  %558 = vmatprep.subr.mxu0 0.0
  %559 = vmatpush1.msra.mxu0 0.0
  %560 = vmatprep.subr.mxu0 0.0
  %561 = vmatpush1.msra.mxu0 0.0
  %562 = vmatprep.subr.mxu0 0.0
  %563 = vmatpush1.msra.mxu0 0.0
  %564 = vmatprep.subr.mxu0 0.0
  %565 = vmatpush1.msra.mxu0 0.0
  %566 = vmatprep.subr.mxu0 0.0
  %567 = vmatpush1.msra.mxu0 0.0
  %568 = vmatprep.subr.mxu0 0.0
  %569 = vmatpush1.msra.mxu0 0.0
  %570 = vmatprep.subr.mxu0 0.0
  %571 = vmatpush1.msra.mxu0 0.0
  %572 = vmatprep.subr.mxu0 0.0
  %573 = vmatpush1.msra.mxu0 0.0
  %574 = vmatprep.subr.mxu0 0.0
  %575 = vmatpush1.msra.mxu0 0.0
  %576 = vmatprep.subr.mxu0 0.0
  %577 = vmatpush1.msra.mxu0 0.0
  %578 = vmatprep.subr.mxu0 0.0
  %579 = vmatpush1.msra.mxu0 0.0
  %580 = vmatprep.subr.mxu0 0.0
  %581 = vmatpush1.msra.mxu0 0.0
  %582 = vmatprep.subr.mxu0 0.0
  %583 = vmatpush1.msra.mxu0 0.0
  %584 = vmatprep.subr.mxu0 0.0
  %585 = vmatpush1.msra.mxu0 0.0
  %586 = vmatprep.subr.mxu0 0.0
  %587 = vmatpush1.msra.mxu0 0.0
  %588 = vmatprep.subr.mxu0 0.0
  %589 = vmatpush1.msra.mxu0 0.0
  %590 = vmatprep.subr.mxu0 0.0
  %591 = vmatpush1.msra.mxu0 0.0
  %592 = vmatprep.subr.mxu0 0.0
  %593 = vmatpush1.msra.mxu0 0.0
  %594 = vmatprep.subr.mxu0 0.0
  %595 = vmatpush1.msra.mxu0 0.0
  %596 = vmatprep.subr.mxu0 0.0
  %597 = vmatpush1.msra.mxu0 0.0
  %598 = vmatprep.subr.mxu0 0.0
  %599 = vmatpush1.msra.mxu0 0.0
  %600 = vmatprep.subr.mxu0 0.0
  %601 = vmatpush1.msra.mxu0 0.0
  %602 = vmatprep.subr.mxu0 0.0
  %603 = vmatpush1.msra.mxu0 0.0
  %604 = vmatprep.mubr.f32.mxu0 0.0
  %605 = vmatmul.mubr.f32.gmra.mrb[0].mxu0 %v538
  %v606 = vpop.f32.mrb[0].mxu0
  %v607 = vadd.f32 0.0, %v606
  %v608 = vpop.f32.mrb[0].mxu0
  %v609 = vadd.f32 0.0, %v608
  %610 = vdwg.mxu0
  %v613 = vrot.slane %v607, 4
  %v614 = vrot.slane %v609, 4
  %v617 = vadd.f32 %v291, %v613
  %v618 = vadd.f32 %v297, %v614
  %v619 = vxor.u32 %v617, 2147483648
  %v620 = vxor.u32 %v618, 2147483648
  %v621 = vmul.f32 %v619, 1.442695
  %v622 = vpow.pop %v621
  %v623 = vmul.f32 %v620, 1.442695
  %v624 = vpow.pop %v623
  %v625 = vadd.f32 %v622, 1.0
  %v626 = vadd.f32 %v624, 1.0
  %v627 = vrcp.pop %v625
  %v628 = vmul.f32 1.0, %v627
  %v629 = vrcp.pop %v626
  %v630 = vmul.f32 1.0, %v629
  %v631 = vtanh.pop %v618
  %v633 = vrot.slane %v529, 6
  %v635 = vmul.f32 %v628, %v633
  %637 = vrot.lane.b32.xlu0 %v631, 64
  %v638 = vpop.permute.xlu0 %637
  %v640 = vmul.f32 %v628, %v638
  %642 = vrot.lane.b32.xlu0 %v640, 64
  %v643 = vpop.permute.xlu0 %642
  %v645 = vadd.f32 %v635, %v643
  %v646 = vtanh.pop %v645
  %648 = vrot.lane.b32.xlu0 %v646, 64
  %v649 = vpop.permute.xlu0 %648
  %v651 = vmul.f32 %v630, %v649
  %v653 = vrot.slane %v651, 4
  %v654 = vsel %vm287, %v653, 0
  %656 = vmatprep.subr.mxu0 %v300
  %657 = vmatpush1.msra.mxu0 %v299
  %658 = vmatprep.subr.mxu0 %v302
  %659 = vmatpush1.msra.mxu0 %v301
  %660 = vmatprep.subr.mxu0 %v304
  %661 = vmatpush1.msra.mxu0 %v303
  %662 = vmatprep.subr.mxu0 %v306
  %663 = vmatpush1.msra.mxu0 %v305
  %664 = vmatprep.subr.mxu0 %v308
  %665 = vmatpush1.msra.mxu0 %v307
  %666 = vmatprep.subr.mxu0 %v310
  %667 = vmatpush1.msra.mxu0 %v309
  %668 = vmatprep.subr.mxu0 %v312
  %669 = vmatpush1.msra.mxu0 %v311
  %670 = vmatprep.subr.mxu0 %v314
  %671 = vmatpush1.msra.mxu0 %v313
  %672 = vmatprep.subr.mxu0 0.0
  %673 = vmatpush1.msra.mxu0 0.0
  %674 = vmatprep.subr.mxu0 0.0
  %675 = vmatpush1.msra.mxu0 0.0
  %676 = vmatprep.subr.mxu0 0.0
  %677 = vmatpush1.msra.mxu0 0.0
  %678 = vmatprep.subr.mxu0 0.0
  %679 = vmatpush1.msra.mxu0 0.0
  %680 = vmatprep.subr.mxu0 0.0
  %681 = vmatpush1.msra.mxu0 0.0
  %682 = vmatprep.subr.mxu0 0.0
  %683 = vmatpush1.msra.mxu0 0.0
  %684 = vmatprep.subr.mxu0 0.0
  %685 = vmatpush1.msra.mxu0 0.0
  %686 = vmatprep.subr.mxu0 0.0
  %687 = vmatpush1.msra.mxu0 0.0
  %688 = vmatprep.subr.mxu0 0.0
  %689 = vmatpush1.msra.mxu0 0.0
  %690 = vmatprep.subr.mxu0 0.0
  %691 = vmatpush1.msra.mxu0 0.0
  %692 = vmatprep.subr.mxu0 0.0
  %693 = vmatpush1.msra.mxu0 0.0
  %694 = vmatprep.subr.mxu0 0.0
  %695 = vmatpush1.msra.mxu0 0.0
  %696 = vmatprep.subr.mxu0 0.0
  %697 = vmatpush1.msra.mxu0 0.0
  %698 = vmatprep.subr.mxu0 0.0
  %699 = vmatpush1.msra.mxu0 0.0
  %700 = vmatprep.subr.mxu0 0.0
  %701 = vmatpush1.msra.mxu0 0.0
  %702 = vmatprep.subr.mxu0 0.0
  %703 = vmatpush1.msra.mxu0 0.0
  %704 = vmatprep.subr.mxu0 0.0
  %705 = vmatpush1.msra.mxu0 0.0
  %706 = vmatprep.subr.mxu0 0.0
  %707 = vmatpush1.msra.mxu0 0.0
  %708 = vmatprep.subr.mxu0 0.0
  %709 = vmatpush1.msra.mxu0 0.0
  %710 = vmatprep.subr.mxu0 0.0
  %711 = vmatpush1.msra.mxu0 0.0
  %712 = vmatprep.subr.mxu0 0.0
  %713 = vmatpush1.msra.mxu0 0.0
  %714 = vmatprep.subr.mxu0 0.0
  %715 = vmatpush1.msra.mxu0 0.0
  %716 = vmatprep.subr.mxu0 0.0
  %717 = vmatpush1.msra.mxu0 0.0
  %718 = vmatprep.subr.mxu0 0.0
  %719 = vmatpush1.msra.mxu0 0.0
  %720 = vmatprep.mubr.f32.mxu0 0.0
  %721 = vmatmul.mubr.f32.gmra.mrb[0].mxu0 %v654
  %v722 = vpop.f32.mrb[0].mxu0
  %v723 = vadd.f32 0.0, %v722
  %v724 = vpop.f32.mrb[0].mxu0
  %v725 = vadd.f32 0.0, %v724
  %726 = vdwg.mxu0
  %v729 = vrot.slane %v723, 2
  %v730 = vrot.slane %v725, 2
  %v733 = vadd.f32 %v291, %v729
  %v734 = vadd.f32 %v297, %v730
  %v735 = vxor.u32 %v733, 2147483648
  %v736 = vxor.u32 %v734, 2147483648
  %v737 = vmul.f32 %v735, 1.442695
  %v738 = vpow.pop %v737
  %v739 = vmul.f32 %v736, 1.442695
  %v740 = vpow.pop %v739
  %v741 = vadd.f32 %v738, 1.0
  %v742 = vadd.f32 %v740, 1.0
  %v743 = vrcp.pop %v741
  %v744 = vmul.f32 1.0, %v743
  %v745 = vrcp.pop %v742
  %v746 = vmul.f32 1.0, %v745
  %v747 = vtanh.pop %v734
  %v749 = vrot.slane %v645, 6
  %v751 = vmul.f32 %v744, %v749
  %753 = vrot.lane.b32.xlu0 %v747, 64
  %v754 = vpop.permute.xlu0 %753
  %v756 = vmul.f32 %v744, %v754
  %758 = vrot.lane.b32.xlu0 %v756, 64
  %v759 = vpop.permute.xlu0 %758
  %v761 = vadd.f32 %v751, %v759
  %v762 = vtanh.pop %v761
  %764 = vrot.lane.b32.xlu0 %v762, 64
  %v765 = vpop.permute.xlu0 %764
  %v767 = vmul.f32 %v746, %v765
  %v769 = vrot.slane %v767, 6
  %v770 = vsel %vm287, %v769, 0
  %772 = vmatprep.subr.mxu0 %v300
  %773 = vmatpush1.msra.mxu0 %v299
  %774 = vmatprep.subr.mxu0 %v302
  %775 = vmatpush1.msra.mxu0 %v301
  %776 = vmatprep.subr.mxu0 %v304
  %777 = vmatpush1.msra.mxu0 %v303
  %778 = vmatprep.subr.mxu0 %v306
  %779 = vmatpush1.msra.mxu0 %v305
  %780 = vmatprep.subr.mxu0 %v308
  %781 = vmatpush1.msra.mxu0 %v307
  %782 = vmatprep.subr.mxu0 %v310
  %783 = vmatpush1.msra.mxu0 %v309
  %784 = vmatprep.subr.mxu0 %v312
  %785 = vmatpush1.msra.mxu0 %v311
  %786 = vmatprep.subr.mxu0 %v314
  %787 = vmatpush1.msra.mxu0 %v313
  %788 = vmatprep.subr.mxu0 0.0
  %789 = vmatpush1.msra.mxu0 0.0
  %790 = vmatprep.subr.mxu0 0.0
  %791 = vmatpush1.msra.mxu0 0.0
  %792 = vmatprep.subr.mxu0 0.0
  %793 = vmatpush1.msra.mxu0 0.0
  %794 = vmatprep.subr.mxu0 0.0
  %795 = vmatpush1.msra.mxu0 0.0
  %796 = vmatprep.subr.mxu0 0.0
  %797 = vmatpush1.msra.mxu0 0.0
  %798 = vmatprep.subr.mxu0 0.0
  %799 = vmatpush1.msra.mxu0 0.0
  %800 = vmatprep.subr.mxu0 0.0
  %801 = vmatpush1.msra.mxu0 0.0
  %802 = vmatprep.subr.mxu0 0.0
  %803 = vmatpush1.msra.mxu0 0.0
  %804 = vmatprep.subr.mxu0 0.0
  %805 = vmatpush1.msra.mxu0 0.0
  %806 = vmatprep.subr.mxu0 0.0
  %807 = vmatpush1.msra.mxu0 0.0
  %808 = vmatprep.subr.mxu0 0.0
  %809 = vmatpush1.msra.mxu0 0.0
  %810 = vmatprep.subr.mxu0 0.0
  %811 = vmatpush1.msra.mxu0 0.0
  %812 = vmatprep.subr.mxu0 0.0
  %813 = vmatpush1.msra.mxu0 0.0
  %814 = vmatprep.subr.mxu0 0.0
  %815 = vmatpush1.msra.mxu0 0.0
  %816 = vmatprep.subr.mxu0 0.0
  %817 = vmatpush1.msra.mxu0 0.0
  %818 = vmatprep.subr.mxu0 0.0
  %819 = vmatpush1.msra.mxu0 0.0
  %820 = vmatprep.subr.mxu0 0.0
  %821 = vmatpush1.msra.mxu0 0.0
  %822 = vmatprep.subr.mxu0 0.0
  %823 = vmatpush1.msra.mxu0 0.0
  %824 = vmatprep.subr.mxu0 0.0
  %825 = vmatpush1.msra.mxu0 0.0
  %826 = vmatprep.subr.mxu0 0.0
  %827 = vmatpush1.msra.mxu0 0.0
  %828 = vmatprep.subr.mxu0 0.0
  %829 = vmatpush1.msra.mxu0 0.0
  %830 = vmatprep.subr.mxu0 0.0
  %831 = vmatpush1.msra.mxu0 0.0
  %832 = vmatprep.subr.mxu0 0.0
  %833 = vmatpush1.msra.mxu0 0.0
  %834 = vmatprep.subr.mxu0 0.0
  %835 = vmatpush1.msra.mxu0 0.0
  %836 = vmatprep.mubr.f32.mxu0 0.0
  %837 = vmatmul.mubr.f32.gmra.mrb[0].mxu0 %v770
  %v838 = vpop.f32.mrb[0].mxu0
  %v839 = vadd.f32 0.0, %v838
  %v840 = vpop.f32.mrb[0].mxu0
  %v841 = vadd.f32 0.0, %v840
  %842 = vdwg.mxu0
  %v843 = vadd.f32 %v292, %v839
  %v844 = vadd.f32 %v298, %v841
  %v845 = vxor.u32 %v843, 2147483648
  %v846 = vxor.u32 %v844, 2147483648
  %v847 = vmul.f32 %v845, 1.442695
  %v848 = vpow.pop %v847
  %v849 = vmul.f32 %v846, 1.442695
  %v850 = vpow.pop %v849
  %v851 = vadd.f32 %v848, 1.0
  %v852 = vadd.f32 %v850, 1.0
  %v853 = vrcp.pop %v851
  %v854 = vmul.f32 1.0, %v853
  %v855 = vrcp.pop %v852
  %v856 = vmul.f32 1.0, %v855
  %v857 = vtanh.pop %v844
  %v859 = vrot.slane %v761, 6
  %v861 = vmul.f32 %v854, %v859
  %863 = vrot.lane.b32.xlu0 %v857, 64
  %v864 = vpop.permute.xlu0 %863
  %v866 = vmul.f32 %v854, %v864
  %868 = vrot.lane.b32.xlu0 %v866, 64
  %v869 = vpop.permute.xlu0 %868
  %v871 = vadd.f32 %v861, %v869
  %v872 = vtanh.pop %v871
  %874 = vrot.lane.b32.xlu0 %v872, 64
  %v875 = vpop.permute.xlu0 %874
  %v877 = vmul.f32 %v856, %v875
  %v879 = vsel %vm287, %v877, 0
  %881 = vmatprep.subr.mxu0 %v300
  %882 = vmatpush1.msra.mxu0 %v299
  %883 = vmatprep.subr.mxu0 %v302
  %884 = vmatpush1.msra.mxu0 %v301
  %885 = vmatprep.subr.mxu0 %v304
  %886 = vmatpush1.msra.mxu0 %v303
  %887 = vmatprep.subr.mxu0 %v306
  %888 = vmatpush1.msra.mxu0 %v305
  %889 = vmatprep.subr.mxu0 %v308
  %890 = vmatpush1.msra.mxu0 %v307
  %891 = vmatprep.subr.mxu0 %v310
  %892 = vmatpush1.msra.mxu0 %v309
  %893 = vmatprep.subr.mxu0 %v312
  %894 = vmatpush1.msra.mxu0 %v311
  %895 = vmatprep.subr.mxu0 %v314
  %896 = vmatpush1.msra.mxu0 %v313
  %897 = vmatprep.subr.mxu0 0.0
  %898 = vmatpush1.msra.mxu0 0.0
  %899 = vmatprep.subr.mxu0 0.0
  %900 = vmatpush1.msra.mxu0 0.0
  %901 = vmatprep.subr.mxu0 0.0
  %902 = vmatpush1.msra.mxu0 0.0
  %903 = vmatprep.subr.mxu0 0.0
  %904 = vmatpush1.msra.mxu0 0.0
  %905 = vmatprep.subr.mxu0 0.0
  %906 = vmatpush1.msra.mxu0 0.0
  %907 = vmatprep.subr.mxu0 0.0
  %908 = vmatpush1.msra.mxu0 0.0
  %909 = vmatprep.subr.mxu0 0.0
  %910 = vmatpush1.msra.mxu0 0.0
  %911 = vmatprep.subr.mxu0 0.0
  %912 = vmatpush1.msra.mxu0 0.0
  %913 = vmatprep.subr.mxu0 0.0
  %914 = vmatpush1.msra.mxu0 0.0
  %915 = vmatprep.subr.mxu0 0.0
  %916 = vmatpush1.msra.mxu0 0.0
  %917 = vmatprep.subr.mxu0 0.0
  %918 = vmatpush1.msra.mxu0 0.0
  %919 = vmatprep.subr.mxu0 0.0
  %920 = vmatpush1.msra.mxu0 0.0
  %921 = vmatprep.subr.mxu0 0.0
  %922 = vmatpush1.msra.mxu0 0.0
  %923 = vmatprep.subr.mxu0 0.0
  %924 = vmatpush1.msra.mxu0 0.0
  %925 = vmatprep.subr.mxu0 0.0
  %926 = vmatpush1.msra.mxu0 0.0
  %927 = vmatprep.subr.mxu0 0.0
  %928 = vmatpush1.msra.mxu0 0.0
  %929 = vmatprep.subr.mxu0 0.0
  %930 = vmatpush1.msra.mxu0 0.0
  %931 = vmatprep.subr.mxu0 0.0
  %932 = vmatpush1.msra.mxu0 0.0
  %933 = vmatprep.subr.mxu0 0.0
  %934 = vmatpush1.msra.mxu0 0.0
  %935 = vmatprep.subr.mxu0 0.0
  %936 = vmatpush1.msra.mxu0 0.0
  %937 = vmatprep.subr.mxu0 0.0
  %938 = vmatpush1.msra.mxu0 0.0
  %939 = vmatprep.subr.mxu0 0.0
  %940 = vmatpush1.msra.mxu0 0.0
  %941 = vmatprep.subr.mxu0 0.0
  %942 = vmatpush1.msra.mxu0 0.0
  %943 = vmatprep.subr.mxu0 0.0
  %944 = vmatpush1.msra.mxu0 0.0
  %945 = vmatprep.mubr.f32.mxu0 0.0
  %946 = vmatmul.mubr.f32.gmra.mrb[0].mxu0 %v879
  %v947 = vpop.f32.mrb[0].mxu0
  %v948 = vadd.f32 0.0, %v947
  %v949 = vpop.f32.mrb[0].mxu0
  %v950 = vadd.f32 0.0, %v949
  %951 = vdwg.mxu0
  %v954 = vrot.slane %v948, 6
  %v955 = vrot.slane %v950, 6
  %v958 = vadd.f32 %v292, %v954
  %v959 = vadd.f32 %v298, %v955
  %v960 = vxor.u32 %v958, 2147483648
  %v961 = vxor.u32 %v959, 2147483648
  %v962 = vmul.f32 %v960, 1.442695
  %v963 = vpow.pop %v962
  %v964 = vmul.f32 %v961, 1.442695
  %v965 = vpow.pop %v964
  %v966 = vadd.f32 %v963, 1.0
  %v967 = vadd.f32 %v965, 1.0
  %v968 = vrcp.pop %v966
  %v969 = vmul.f32 1.0, %v968
  %v970 = vrcp.pop %v967
  %v971 = vmul.f32 1.0, %v970
  %v972 = vtanh.pop %v959
  %v974 = vrot.slane %v871, 6
  %v976 = vmul.f32 %v969, %v974
  %978 = vrot.lane.b32.xlu0 %v972, 64
  %v979 = vpop.permute.xlu0 %978
  %v981 = vmul.f32 %v969, %v979
  %983 = vrot.lane.b32.xlu0 %v981, 64
  %v984 = vpop.permute.xlu0 %983
  %v986 = vadd.f32 %v976, %v984
  %v987 = vtanh.pop %v986
  %989 = vrot.lane.b32.xlu0 %v987, 64
  %v990 = vpop.permute.xlu0 %989
  %v992 = vmul.f32 %v971, %v990
  %v993 = vld [vmem:[%s7] sm:$0xff]
  %v994 = vld [vmem:[%s7 + $0x8] sm:$0xff]
  %v995 = vld [vmem:[%s7 + $0x10] sm:$0xff]
  %v996 = vld [vmem:[%s7 + $0x18] sm:$0xff]
  %v998 = vrot.slane %v992, 2
  %v999 = vsel %vm69, %v998, 0
  %1001 = vmatprep.subr.mxu0 0.0
  %1002 = vmatpush1.msra.mxu0 %v993
  %1003 = vmatprep.subr.mxu0 0.0
  %1004 = vmatpush1.msra.mxu0 %v994
  %1005 = vmatprep.subr.mxu0 0.0
  %1006 = vmatpush1.msra.mxu0 %v995
  %1007 = vmatprep.subr.mxu0 0.0
  %1008 = vmatpush1.msra.mxu0 %v996
  %1009 = vmatprep.subr.mxu0 0.0
  %1010 = vmatpush1.msra.mxu0 0.0
  %1011 = vmatprep.subr.mxu0 0.0
  %1012 = vmatpush1.msra.mxu0 0.0
  %1013 = vmatprep.subr.mxu0 0.0
  %1014 = vmatpush1.msra.mxu0 0.0
  %1015 = vmatprep.subr.mxu0 0.0
  %1016 = vmatpush1.msra.mxu0 0.0
  %1017 = vmatprep.subr.mxu0 0.0
  %1018 = vmatpush1.msra.mxu0 0.0
  %1019 = vmatprep.subr.mxu0 0.0
  %1020 = vmatpush1.msra.mxu0 0.0
  %1021 = vmatprep.subr.mxu0 0.0
  %1022 = vmatpush1.msra.mxu0 0.0
  %1023 = vmatprep.subr.mxu0 0.0
  %1024 = vmatpush1.msra.mxu0 0.0
  %1025 = vmatprep.subr.mxu0 0.0
  %1026 = vmatpush1.msra.mxu0 0.0
  %1027 = vmatprep.subr.mxu0 0.0
  %1028 = vmatpush1.msra.mxu0 0.0
  %1029 = vmatprep.subr.mxu0 0.0
  %1030 = vmatpush1.msra.mxu0 0.0
  %1031 = vmatprep.subr.mxu0 0.0
  %1032 = vmatpush1.msra.mxu0 0.0
  %1033 = vmatprep.subr.mxu0 0.0
  %1034 = vmatpush1.msra.mxu0 0.0
  %1035 = vmatprep.subr.mxu0 0.0
  %1036 = vmatpush1.msra.mxu0 0.0
  %1037 = vmatprep.subr.mxu0 0.0
  %1038 = vmatpush1.msra.mxu0 0.0
  %1039 = vmatprep.subr.mxu0 0.0
  %1040 = vmatpush1.msra.mxu0 0.0
  %1041 = vmatprep.subr.mxu0 0.0
  %1042 = vmatpush1.msra.mxu0 0.0
  %1043 = vmatprep.subr.mxu0 0.0
  %1044 = vmatpush1.msra.mxu0 0.0
  %1045 = vmatprep.subr.mxu0 0.0
  %1046 = vmatpush1.msra.mxu0 0.0
  %1047 = vmatprep.subr.mxu0 0.0
  %1048 = vmatpush1.msra.mxu0 0.0
  %1049 = vmatprep.subr.mxu0 0.0
  %1050 = vmatpush1.msra.mxu0 0.0
  %1051 = vmatprep.subr.mxu0 0.0
  %1052 = vmatpush1.msra.mxu0 0.0
  %1053 = vmatprep.subr.mxu0 0.0
  %1054 = vmatpush1.msra.mxu0 0.0
  %1055 = vmatprep.subr.mxu0 0.0
  %1056 = vmatpush1.msra.mxu0 0.0
  %1057 = vmatprep.subr.mxu0 0.0
  %1058 = vmatpush1.msra.mxu0 0.0
  %1059 = vmatprep.subr.mxu0 0.0
  %1060 = vmatpush1.msra.mxu0 0.0
  %1061 = vmatprep.subr.mxu0 0.0
  %1062 = vmatpush1.msra.mxu0 0.0
  %1063 = vmatprep.subr.mxu0 0.0
  %1064 = vmatpush1.msra.mxu0 0.0
  %1065 = vmatprep.mubr.f32.mxu0 0.0
  %1066 = vmatmul.mubr.f32.gmra.mrb[0].mxu0 %v999
  %v1067 = vpop.f32.mrb[0].mxu0
  %v1068 = vadd.f32 0.0, %v1067
  %v1069 = vpop.f32.mrb[0].mxu0
  %1070 = vdwg.mxu0
  %v1072 = vrot.slane %v1068, 4
  %v1074 = vadd.f32 %v148, %v1072
  %v1075 = vxor.u32 %v1074, 2147483648
  %v1076 = vmul.f32 %v1075, 1.442695
  %v1077 = vpow.pop %v1076
  %v1078 = vadd.f32 %v1077, 1.0
  %v1079 = vrcp.pop %v1078
  %v1080 = vmul.f32 1.0, %v1079
  %v1081 = vtanh.pop %v1074
  %v1083 = vrot.slane %v986, 6
  %1084 = vrot.lane.b32.xlu0 %v1083, 96
  %v1085 = vpop.permute.xlu0 %1084
  %v1087 = vmul.f32 %v1080, %v1085
  %1089 = vrot.lane.b32.xlu0 %v1081, 32
  %v1090 = vpop.permute.xlu0 %1089
  %v1092 = vmul.f32 %v1080, %v1090
  %1094 = vrot.lane.b32.xlu0 %v1092, 32
  %v1095 = vpop.permute.xlu0 %1094
  %v1097 = vadd.f32 %v1087, %v1095
  %v1098 = vtanh.pop %v1097
  %1100 = vrot.lane.b32.xlu0 %v1098, 32
  %v1101 = vpop.permute.xlu0 %1100
  %v1103 = vmul.f32 %v1080, %v1101
  %v1105 = vrot.slane %v1103, 4
  %1106 = vrot.lane.b32.xlu0 %v1105, 64
  %v1107 = vpop.permute.xlu0 %1106
  %v1108 = vsel %vm69, %v1107, 0
  %1110 = vmatprep.subr.mxu0 0.0
  %1111 = vmatpush1.msra.mxu0 %v993
  %1112 = vmatprep.subr.mxu0 0.0
  %1113 = vmatpush1.msra.mxu0 %v994
  %1114 = vmatprep.subr.mxu0 0.0
  %1115 = vmatpush1.msra.mxu0 %v995
  %1116 = vmatprep.subr.mxu0 0.0
  %1117 = vmatpush1.msra.mxu0 %v996
  %1118 = vmatprep.subr.mxu0 0.0
  %1119 = vmatpush1.msra.mxu0 0.0
  %1120 = vmatprep.subr.mxu0 0.0
  %1121 = vmatpush1.msra.mxu0 0.0
  %1122 = vmatprep.subr.mxu0 0.0
  %1123 = vmatpush1.msra.mxu0 0.0
  %1124 = vmatprep.subr.mxu0 0.0
  %1125 = vmatpush1.msra.mxu0 0.0
  %1126 = vmatprep.subr.mxu0 0.0
  %1127 = vmatpush1.msra.mxu0 0.0
  %1128 = vmatprep.subr.mxu0 0.0
  %1129 = vmatpush1.msra.mxu0 0.0
  %1130 = vmatprep.subr.mxu0 0.0
  %1131 = vmatpush1.msra.mxu0 0.0
  %1132 = vmatprep.subr.mxu0 0.0
  %1133 = vmatpush1.msra.mxu0 0.0
  %1134 = vmatprep.subr.mxu0 0.0
  %1135 = vmatpush1.msra.mxu0 0.0
  %1136 = vmatprep.subr.mxu0 0.0
  %1137 = vmatpush1.msra.mxu0 0.0
  %1138 = vmatprep.subr.mxu0 0.0
  %1139 = vmatpush1.msra.mxu0 0.0
  %1140 = vmatprep.subr.mxu0 0.0
  %1141 = vmatpush1.msra.mxu0 0.0
  %1142 = vmatprep.subr.mxu0 0.0
  %1143 = vmatpush1.msra.mxu0 0.0
  %1144 = vmatprep.subr.mxu0 0.0
  %1145 = vmatpush1.msra.mxu0 0.0
  %1146 = vmatprep.subr.mxu0 0.0
  %1147 = vmatpush1.msra.mxu0 0.0
  %1148 = vmatprep.subr.mxu0 0.0
  %1149 = vmatpush1.msra.mxu0 0.0
  %1150 = vmatprep.subr.mxu0 0.0
  %1151 = vmatpush1.msra.mxu0 0.0
  %1152 = vmatprep.subr.mxu0 0.0
  %1153 = vmatpush1.msra.mxu0 0.0
  %1154 = vmatprep.subr.mxu0 0.0
  %1155 = vmatpush1.msra.mxu0 0.0
  %1156 = vmatprep.subr.mxu0 0.0
  %1157 = vmatpush1.msra.mxu0 0.0
  %1158 = vmatprep.subr.mxu0 0.0
  %1159 = vmatpush1.msra.mxu0 0.0
  %1160 = vmatprep.subr.mxu0 0.0
  %1161 = vmatpush1.msra.mxu0 0.0
  %1162 = vmatprep.subr.mxu0 0.0
  %1163 = vmatpush1.msra.mxu0 0.0
  %1164 = vmatprep.subr.mxu0 0.0
  %1165 = vmatpush1.msra.mxu0 0.0
  %1166 = vmatprep.subr.mxu0 0.0
  %1167 = vmatpush1.msra.mxu0 0.0
  %1168 = vmatprep.subr.mxu0 0.0
  %1169 = vmatpush1.msra.mxu0 0.0
  %1170 = vmatprep.subr.mxu0 0.0
  %1171 = vmatpush1.msra.mxu0 0.0
  %1172 = vmatprep.subr.mxu0 0.0
  %1173 = vmatpush1.msra.mxu0 0.0
  %1174 = vmatprep.mubr.f32.mxu0 0.0
  %1175 = vmatmul.mubr.f32.gmra.mrb[0].mxu0 %v1108
  %v1176 = vpop.f32.mrb[0].mxu0
  %v1177 = vadd.f32 0.0, %v1176
  %v1178 = vpop.f32.mrb[0].mxu0
  %1179 = vdwg.mxu0
  %v1181 = vrot.slane %v1177, 2
  %v1183 = vadd.f32 %v148, %v1181
  %v1184 = vxor.u32 %v1183, 2147483648
  %v1185 = vmul.f32 %v1184, 1.442695
  %v1186 = vpow.pop %v1185
  %v1187 = vadd.f32 %v1186, 1.0
  %v1188 = vrcp.pop %v1187
  %v1189 = vmul.f32 1.0, %v1188
  %v1190 = vtanh.pop %v1183
  %v1192 = vrot.slane %v1097, 6
  %v1194 = vmul.f32 %v1189, %v1192
  %1196 = vrot.lane.b32.xlu0 %v1190, 32
  %v1197 = vpop.permute.xlu0 %1196
  %v1199 = vmul.f32 %v1189, %v1197
  %1201 = vrot.lane.b32.xlu0 %v1199, 32
  %v1202 = vpop.permute.xlu0 %1201
  %v1204 = vadd.f32 %v1194, %v1202
  %v1205 = vtanh.pop %v1204
  %1207 = vrot.lane.b32.xlu0 %v1205, 32
  %v1208 = vpop.permute.xlu0 %1207
  %v1210 = vmul.f32 %v1189, %v1208
  %1211 = vrot.lane.b32.xlu0 %v1103, 64
  %v1212 = vpop.permute.xlu0 %1211
  %1215 = vrot.lane.b32.xlu0 %v1210, 64
  %v1216 = vpop.permute.xlu0 %1215
  %vm1218 = vcmask 1041408
  %v1219 = vsel %vm1218, %v420, %v535
  %vm1220 = vcmask 1043456
  %v1221 = vsel %vm1220, %v1219, %v651
  %vm1222 = vcmask 1045504
  %v1223 = vsel %vm1222, %v1221, %v767
  %v1224 = vsel %vm1218, %v877, %v992
  %v1225 = vsel %vm1220, %v1224, %v1212
  %v1226 = vsel %vm1222, %v1225, %v1216
  %v1227 = vld [vmem:[%s9] sm:$0xff]
  %v1228 = vld [vmem:[%s9 + $0x8] sm:$0xff]
  %v1229 = vld [vmem:[%s9 + $0x10] sm:$0xff]
  %v1230 = vld [vmem:[%s9 + $0x18] sm:$0xff]
  %v1231 = vld [vmem:[%s10] sm:$0x1]
  %v1233 = vlaneseq
  %v1234 = vshrl.u32 %v1233, 7
  %v1235 = vsub.s32 0, %v1234
  %v1236 = vrot.slane %v1231, %v1235
  %v1239 = vsel %vm69, %v1223, 0
  %v1242 = vsel %vm69, %v1226, 0
  %1244 = vmatprep.subr.mxu0 0.0
  %1245 = vmatpush1.msra.mxu0 %v1227
  %1246 = vmatprep.subr.mxu0 0.0
  %1247 = vmatpush1.msra.mxu0 %v1228
  %1248 = vmatprep.subr.mxu0 0.0
  %1249 = vmatpush1.msra.mxu0 %v1229
  %1250 = vmatprep.subr.mxu0 0.0
  %1251 = vmatpush1.msra.mxu0 %v1230
  %1252 = vmatprep.subr.mxu0 0.0
  %1253 = vmatpush1.msra.mxu0 0.0
  %1254 = vmatprep.subr.mxu0 0.0
  %1255 = vmatpush1.msra.mxu0 0.0
  %1256 = vmatprep.subr.mxu0 0.0
  %1257 = vmatpush1.msra.mxu0 0.0
  %1258 = vmatprep.subr.mxu0 0.0
  %1259 = vmatpush1.msra.mxu0 0.0
  %1260 = vmatprep.subr.mxu0 0.0
  %1261 = vmatpush1.msra.mxu0 0.0
  %1262 = vmatprep.subr.mxu0 0.0
  %1263 = vmatpush1.msra.mxu0 0.0
  %1264 = vmatprep.subr.mxu0 0.0
  %1265 = vmatpush1.msra.mxu0 0.0
  %1266 = vmatprep.subr.mxu0 0.0
  %1267 = vmatpush1.msra.mxu0 0.0
  %1268 = vmatprep.subr.mxu0 0.0
  %1269 = vmatpush1.msra.mxu0 0.0
  %1270 = vmatprep.subr.mxu0 0.0
  %1271 = vmatpush1.msra.mxu0 0.0
  %1272 = vmatprep.subr.mxu0 0.0
  %1273 = vmatpush1.msra.mxu0 0.0
  %1274 = vmatprep.subr.mxu0 0.0
  %1275 = vmatpush1.msra.mxu0 0.0
  %1276 = vmatprep.subr.mxu0 0.0
  %1277 = vmatpush1.msra.mxu0 0.0
  %1278 = vmatprep.subr.mxu0 0.0
  %1279 = vmatpush1.msra.mxu0 0.0
  %1280 = vmatprep.subr.mxu0 0.0
  %1281 = vmatpush1.msra.mxu0 0.0
  %1282 = vmatprep.subr.mxu0 0.0
  %1283 = vmatpush1.msra.mxu0 0.0
  %1284 = vmatprep.subr.mxu0 0.0
  %1285 = vmatpush1.msra.mxu0 0.0
  %1286 = vmatprep.subr.mxu0 0.0
  %1287 = vmatpush1.msra.mxu0 0.0
  %1288 = vmatprep.subr.mxu0 0.0
  %1289 = vmatpush1.msra.mxu0 0.0
  %1290 = vmatprep.subr.mxu0 0.0
  %1291 = vmatpush1.msra.mxu0 0.0
  %1292 = vmatprep.subr.mxu0 0.0
  %1293 = vmatpush1.msra.mxu0 0.0
  %1294 = vmatprep.subr.mxu0 0.0
  %1295 = vmatpush1.msra.mxu0 0.0
  %1296 = vmatprep.subr.mxu0 0.0
  %1297 = vmatpush1.msra.mxu0 0.0
  %1298 = vmatprep.subr.mxu0 0.0
  %1299 = vmatpush1.msra.mxu0 0.0
  %1300 = vmatprep.subr.mxu0 0.0
  %1301 = vmatpush1.msra.mxu0 0.0
  %1302 = vmatprep.subr.mxu0 0.0
  %1303 = vmatpush1.msra.mxu0 0.0
  %1304 = vmatprep.subr.mxu0 0.0
  %1305 = vmatpush1.msra.mxu0 0.0
  %1306 = vmatprep.subr.mxu0 0.0
  %1307 = vmatpush1.msra.mxu0 0.0
  %1308 = vmatprep.mubr.f32.mxu0 0.0
  %1309 = vmatmul.mubr.f32.gmra.mrb[0].mxu0 %v1239
  %v1310 = vpop.f32.mrb[0].mxu0
  %v1311 = vadd.f32 %v1236, %v1310
  %v1312 = vpop.f32.mrb[0].mxu0
  %1313 = vmatprep.mubr.f32.mxu0 0.0
  %1314 = vmatmul.mubr.f32.gmra.mrb[0].mxu0 %v1242
  %v1315 = vpop.f32.mrb[0].mxu0
  %v1316 = vadd.f32 %v1236, %v1315
  %v1317 = vpop.f32.mrb[0].mxu0
  %1318 = vdwg.mxu0
  %v1319 = vld [vmem:[%s11] sm:$0xff]
  %v1320 = vld [vmem:[%s11 + $0x8] sm:$0xff]
  %v1321 = vld [vmem:[%s11 + $0x10] sm:$0xff]
  %v1322 = vld [vmem:[%s11 + $0x18] sm:$0xff]
  %v1323 = vld [vmem:[%s12] sm:$0x1]
  %v1325 = vlaneseq
  %v1326 = vshrl.u32 %v1325, 7
  %v1327 = vsub.s32 0, %v1326
  %v1328 = vrot.slane %v1323, %v1327
  %1330 = vrot.lane.b32.xlu0 %v998, 96
  %v1331 = vpop.permute.xlu0 %1330
  %v1332 = vsel %vm69, %v1331, 0
  %1334 = vmatprep.subr.mxu0 0.0
  %1335 = vmatpush1.msra.mxu0 %v1319
  %1336 = vmatprep.subr.mxu0 0.0
  %1337 = vmatpush1.msra.mxu0 %v1320
  %1338 = vmatprep.subr.mxu0 0.0
  %1339 = vmatpush1.msra.mxu0 %v1321
  %1340 = vmatprep.subr.mxu0 0.0
  %1341 = vmatpush1.msra.mxu0 %v1322
  %1342 = vmatprep.subr.mxu0 0.0
  %1343 = vmatpush1.msra.mxu0 0.0
  %1344 = vmatprep.subr.mxu0 0.0
  %1345 = vmatpush1.msra.mxu0 0.0
  %1346 = vmatprep.subr.mxu0 0.0
  %1347 = vmatpush1.msra.mxu0 0.0
  %1348 = vmatprep.subr.mxu0 0.0
  %1349 = vmatpush1.msra.mxu0 0.0
  %1350 = vmatprep.subr.mxu0 0.0
  %1351 = vmatpush1.msra.mxu0 0.0
  %1352 = vmatprep.subr.mxu0 0.0
  %1353 = vmatpush1.msra.mxu0 0.0
  %1354 = vmatprep.subr.mxu0 0.0
  %1355 = vmatpush1.msra.mxu0 0.0
  %1356 = vmatprep.subr.mxu0 0.0
  %1357 = vmatpush1.msra.mxu0 0.0
  %1358 = vmatprep.subr.mxu0 0.0
  %1359 = vmatpush1.msra.mxu0 0.0
  %1360 = vmatprep.subr.mxu0 0.0
  %1361 = vmatpush1.msra.mxu0 0.0
  %1362 = vmatprep.subr.mxu0 0.0
  %1363 = vmatpush1.msra.mxu0 0.0
  %1364 = vmatprep.subr.mxu0 0.0
  %1365 = vmatpush1.msra.mxu0 0.0
  %1366 = vmatprep.subr.mxu0 0.0
  %1367 = vmatpush1.msra.mxu0 0.0
  %1368 = vmatprep.subr.mxu0 0.0
  %1369 = vmatpush1.msra.mxu0 0.0
  %1370 = vmatprep.subr.mxu0 0.0
  %1371 = vmatpush1.msra.mxu0 0.0
  %1372 = vmatprep.subr.mxu0 0.0
  %1373 = vmatpush1.msra.mxu0 0.0
  %1374 = vmatprep.subr.mxu0 0.0
  %1375 = vmatpush1.msra.mxu0 0.0
  %1376 = vmatprep.subr.mxu0 0.0
  %1377 = vmatpush1.msra.mxu0 0.0
  %1378 = vmatprep.subr.mxu0 0.0
  %1379 = vmatpush1.msra.mxu0 0.0
  %1380 = vmatprep.subr.mxu0 0.0
  %1381 = vmatpush1.msra.mxu0 0.0
  %1382 = vmatprep.subr.mxu0 0.0
  %1383 = vmatpush1.msra.mxu0 0.0
  %1384 = vmatprep.subr.mxu0 0.0
  %1385 = vmatpush1.msra.mxu0 0.0
  %1386 = vmatprep.subr.mxu0 0.0
  %1387 = vmatpush1.msra.mxu0 0.0
  %1388 = vmatprep.subr.mxu0 0.0
  %1389 = vmatpush1.msra.mxu0 0.0
  %1390 = vmatprep.subr.mxu0 0.0
  %1391 = vmatpush1.msra.mxu0 0.0
  %1392 = vmatprep.subr.mxu0 0.0
  %1393 = vmatpush1.msra.mxu0 0.0
  %1394 = vmatprep.subr.mxu0 0.0
  %1395 = vmatpush1.msra.mxu0 0.0
  %1396 = vmatprep.subr.mxu0 0.0
  %1397 = vmatpush1.msra.mxu0 0.0
  %1398 = vmatprep.mubr.f32.mxu0 0.0
  %1399 = vmatmul.mubr.f32.gmra.mrb[0].mxu0 %v1332
  %v1400 = vpop.f32.mrb[0].mxu0
  %v1401 = vadd.f32 %v1328, %v1400
  %v1402 = vpop.f32.mrb[0].mxu0
  %1403 = vdwg.mxu0
  %v1404 = vmul.f32 %v1311, %v1401
  %vm1405 = vcmask 254976
  %v1406 = vsel %vm1405, %v1404, 0.0
  %1407 = vadd.xlane.f32.xlu0 %v1406
  %v1408 = vpop.xlane.xlu0 %1407
  %v1410 = vrot.slane %v1401, 6
  %v1412 = vmul.f32 %v1311, %v1410
  %vm1413 = vcmask 257026
  %v1414 = vsel %vm1413, %v1412, 0.0
  %1415 = vadd.xlane.f32.xlu0 %v1414
  %v1416 = vpop.xlane.xlu0 %1415
  %v1417 = vrot.slane %v1401, 4
  %v1419 = vmul.f32 %v1311, %v1417
  %vm1420 = vcmask 259076
  %v1421 = vsel %vm1420, %v1419, 0.0
  %1422 = vadd.xlane.f32.xlu0 %v1421
  %v1423 = vpop.xlane.xlu0 %1422
  %v1424 = vrot.slane %v1401, 2
  %v1426 = vmul.f32 %v1311, %v1424
  %vm1427 = vcmask 261126
  %v1428 = vsel %vm1427, %v1426, 0.0
  %1429 = vadd.xlane.f32.xlu0 %v1428
  %v1430 = vpop.xlane.xlu0 %1429
  %v1431 = vmul.f32 %v1316, %v1401
  %v1432 = vsel %vm1405, %v1431, 0.0
  %1433 = vadd.xlane.f32.xlu0 %v1432
  %v1434 = vpop.xlane.xlu0 %1433
  %v1435 = vmul.f32 %v1316, %v1410
  %v1436 = vsel %vm1413, %v1435, 0.0
  %1437 = vadd.xlane.f32.xlu0 %v1436
  %v1438 = vpop.xlane.xlu0 %1437
  %v1439 = vmul.f32 %v1316, %v1417
  %v1440 = vsel %vm1420, %v1439, 0.0
  %1441 = vadd.xlane.f32.xlu0 %v1440
  %v1442 = vpop.xlane.xlu0 %1441
  %v1443 = vmul.f32 %v1316, %v1424
  %v1444 = vsel %vm1427, %v1443, 0.0
  %1445 = vadd.xlane.f32.xlu0 %v1444
  %v1446 = vpop.xlane.xlu0 %1445
  %v1448 = vrot.slane %v1416, 2
  %v1450 = vmax.f32 %v1408, %v1448
  %v1452 = vrot.slane %v1423, 4
  %v1454 = vmax.f32 %v1450, %v1452
  %v1456 = vrot.slane %v1430, 6
  %v1458 = vmax.f32 %v1454, %v1456
  %v1459 = vmax.f32 %v1458, %v1434
  %v1461 = vrot.slane %v1438, 2
  %v1463 = vmax.f32 %v1459, %v1461
  %v1465 = vrot.slane %v1442, 4
  %v1467 = vmax.f32 %v1463, %v1465
  %v1469 = vrot.slane %v1446, 6
  %v1471 = vmax.f32 %v1467, %v1469
  %v1472 = vsub.f32 %v1408, %v1471
  %v1473 = vmul.f32 %v1472, 1.442695
  %v1474 = vpow.pop %v1473
  %v1476 = vrot.slane %v1471, 6
  %v1478 = vsub.f32 %v1416, %v1476
  %v1479 = vmul.f32 %v1478, 1.442695
  %v1480 = vpow.pop %v1479
  %v1481 = vrot.slane %v1471, 4
  %v1483 = vsub.f32 %v1423, %v1481
  %v1484 = vmul.f32 %v1483, 1.442695
  %v1485 = vpow.pop %v1484
  %v1486 = vrot.slane %v1471, 2
  %v1488 = vsub.f32 %v1430, %v1486
  %v1489 = vmul.f32 %v1488, 1.442695
  %v1490 = vpow.pop %v1489
  %v1491 = vsub.f32 %v1434, %v1471
  %v1492 = vmul.f32 %v1491, 1.442695
  %v1493 = vpow.pop %v1492
  %v1494 = vsub.f32 %v1438, %v1476
  %v1495 = vmul.f32 %v1494, 1.442695
  %v1496 = vpow.pop %v1495
  %v1497 = vsub.f32 %v1442, %v1481
  %v1498 = vmul.f32 %v1497, 1.442695
  %v1499 = vpow.pop %v1498
  %v1500 = vsub.f32 %v1446, %v1486
  %v1501 = vmul.f32 %v1500, 1.442695
  %v1502 = vpow.pop %v1501
  %v1504 = vrot.slane %v1480, 2
  %v1506 = vadd.f32 %v1474, %v1504
  %v1508 = vrot.slane %v1485, 4
  %v1510 = vadd.f32 %v1506, %v1508
  %v1512 = vrot.slane %v1490, 6
  %v1514 = vadd.f32 %v1510, %v1512
  %v1515 = vadd.f32 %v1514, %v1493
  %v1517 = vrot.slane %v1496, 2
  %v1519 = vadd.f32 %v1515, %v1517
  %v1521 = vrot.slane %v1499, 4
  %v1523 = vadd.f32 %v1519, %v1521
  %v1525 = vrot.slane %v1502, 6
  %v1527 = vadd.f32 %v1523, %v1525
  %v1528 = vrcp.pop %v1527
  %v1529 = vmul.f32 1.0, %v1528
  %v1530 = vmul.f32 %v1474, %v1529
  %v1532 = vrot.slane %v1529, 6
  %v1534 = vmul.f32 %v1480, %v1532
  %v1535 = vrot.slane %v1529, 4
  %v1537 = vmul.f32 %v1485, %v1535
  %v1538 = vrot.slane %v1529, 2
  %v1540 = vmul.f32 %v1490, %v1538
  %v1541 = vmul.f32 %v1493, %v1529
  %v1542 = vmul.f32 %v1496, %v1532
  %v1543 = vmul.f32 %v1499, %v1535
  %v1544 = vmul.f32 %v1502, %v1538
  %1546 = vset.pattern.permute.xlu0 0
  %1547 = vperm.xlu0 %1546, %v1530
  %v1548 = vpop.permute.xlu0 %1547
  %v1550 = vmul.f32 %v1548, %v1311
  %1552 = vset.pattern.permute.xlu0 0
  %1553 = vperm.xlu0 %1552, %v1534
  %v1554 = vpop.permute.xlu0 %1553
  %v1556 = vmul.f32 %v1554, %v1311
  %v1558 = vrot.slane %v1556, 2
  %v1560 = vadd.f32 %v1550, %v1558
  %1562 = vset.pattern.permute.xlu0 0
  %1563 = vperm.xlu0 %1562, %v1537
  %v1564 = vpop.permute.xlu0 %1563
  %v1566 = vmul.f32 %v1564, %v1311
  %1568 = vset.pattern.permute.xlu0 0
  %1569 = vperm.xlu0 %1568, %v1540
  %v1570 = vpop.permute.xlu0 %1569
  %v1572 = vmul.f32 %v1570, %v1311
  %v1574 = vrot.slane %v1572, 2
  %v1576 = vadd.f32 %v1566, %v1574
  %1578 = vset.pattern.permute.xlu0 0
  %1579 = vperm.xlu0 %1578, %v1541
  %v1580 = vpop.permute.xlu0 %1579
  %v1582 = vmul.f32 %v1580, %v1316
  %1584 = vset.pattern.permute.xlu0 0
  %1585 = vperm.xlu0 %1584, %v1542
  %v1586 = vpop.permute.xlu0 %1585
  %v1588 = vmul.f32 %v1586, %v1316
  %v1590 = vrot.slane %v1588, 2
  %v1592 = vadd.f32 %v1582, %v1590
  %1594 = vset.pattern.permute.xlu0 0
  %1595 = vperm.xlu0 %1594, %v1543
  %v1596 = vpop.permute.xlu0 %1595
  %v1598 = vmul.f32 %v1596, %v1316
  %1600 = vset.pattern.permute.xlu0 0
  %1601 = vperm.xlu0 %1600, %v1544
  %v1602 = vpop.permute.xlu0 %1601
  %v1604 = vmul.f32 %v1602, %v1316
  %v1606 = vrot.slane %v1604, 2
  %v1608 = vadd.f32 %v1598, %v1606
  %v1610 = vrot.slane %v1576, 2
  %v1613 = vrot.slane %v1592, 4
  %v1616 = vrot.slane %v1608, 6
  %v1618 = vsel %vm1218, %v1560, %v1610
  %v1619 = vsel %vm1220, %v1618, %v1613
  %v1620 = vsel %vm1222, %v1619, %v1616
  %v1621 = vld [vmem:[%s13] sm:$0xff]
  %v1622 = vld [vmem:[%s13 + $0x8] sm:$0xff]
  %v1623 = vld [vmem:[%s13 + $0x10] sm:$0xff]
  %v1624 = vld [vmem:[%s13 + $0x18] sm:$0xff]
  %v1625 = vld [vmem:[%s14] sm:$0x1]
  %v1627 = vlaneseq
  %v1628 = vshrl.u32 %v1627, 7
  %v1629 = vsub.s32 0, %v1628
  %v1630 = vrot.slane %v1625, %v1629
  %v1633 = vsel %vm69, %v1620, 0
  %1635 = vmatprep.subr.mxu0 0.0
  %1636 = vmatpush1.msra.mxu0 %v1621
  %1637 = vmatprep.subr.mxu0 0.0
  %1638 = vmatpush1.msra.mxu0 %v1622
  %1639 = vmatprep.subr.mxu0 0.0
  %1640 = vmatpush1.msra.mxu0 %v1623
  %1641 = vmatprep.subr.mxu0 0.0
  %1642 = vmatpush1.msra.mxu0 %v1624
  %1643 = vmatprep.subr.mxu0 0.0
  %1644 = vmatpush1.msra.mxu0 0.0
  %1645 = vmatprep.subr.mxu0 0.0
  %1646 = vmatpush1.msra.mxu0 0.0
  %1647 = vmatprep.subr.mxu0 0.0
  %1648 = vmatpush1.msra.mxu0 0.0
  %1649 = vmatprep.subr.mxu0 0.0
  %1650 = vmatpush1.msra.mxu0 0.0
  %1651 = vmatprep.subr.mxu0 0.0
  %1652 = vmatpush1.msra.mxu0 0.0
  %1653 = vmatprep.subr.mxu0 0.0
  %1654 = vmatpush1.msra.mxu0 0.0
  %1655 = vmatprep.subr.mxu0 0.0
  %1656 = vmatpush1.msra.mxu0 0.0
  %1657 = vmatprep.subr.mxu0 0.0
  %1658 = vmatpush1.msra.mxu0 0.0
  %1659 = vmatprep.subr.mxu0 0.0
  %1660 = vmatpush1.msra.mxu0 0.0
  %1661 = vmatprep.subr.mxu0 0.0
  %1662 = vmatpush1.msra.mxu0 0.0
  %1663 = vmatprep.subr.mxu0 0.0
  %1664 = vmatpush1.msra.mxu0 0.0
  %1665 = vmatprep.subr.mxu0 0.0
  %1666 = vmatpush1.msra.mxu0 0.0
  %1667 = vmatprep.subr.mxu0 0.0
  %1668 = vmatpush1.msra.mxu0 0.0
  %1669 = vmatprep.subr.mxu0 0.0
  %1670 = vmatpush1.msra.mxu0 0.0
  %1671 = vmatprep.subr.mxu0 0.0
  %1672 = vmatpush1.msra.mxu0 0.0
  %1673 = vmatprep.subr.mxu0 0.0
  %1674 = vmatpush1.msra.mxu0 0.0
  %1675 = vmatprep.subr.mxu0 0.0
  %1676 = vmatpush1.msra.mxu0 0.0
  %1677 = vmatprep.subr.mxu0 0.0
  %1678 = vmatpush1.msra.mxu0 0.0
  %1679 = vmatprep.subr.mxu0 0.0
  %1680 = vmatpush1.msra.mxu0 0.0
  %1681 = vmatprep.subr.mxu0 0.0
  %1682 = vmatpush1.msra.mxu0 0.0
  %1683 = vmatprep.subr.mxu0 0.0
  %1684 = vmatpush1.msra.mxu0 0.0
  %1685 = vmatprep.subr.mxu0 0.0
  %1686 = vmatpush1.msra.mxu0 0.0
  %1687 = vmatprep.subr.mxu0 0.0
  %1688 = vmatpush1.msra.mxu0 0.0
  %1689 = vmatprep.subr.mxu0 0.0
  %1690 = vmatpush1.msra.mxu0 0.0
  %1691 = vmatprep.subr.mxu0 0.0
  %1692 = vmatpush1.msra.mxu0 0.0
  %1693 = vmatprep.subr.mxu0 0.0
  %1694 = vmatpush1.msra.mxu0 0.0
  %1695 = vmatprep.subr.mxu0 0.0
  %1696 = vmatpush1.msra.mxu0 0.0
  %1697 = vmatprep.subr.mxu0 0.0
  %1698 = vmatpush1.msra.mxu0 0.0
  %1699 = vmatprep.mubr.f32.mxu0 0.0
  %1700 = vmatmul.mubr.f32.gmra.mrb[0].mxu0 %v1633
  %v1701 = vpop.f32.mrb[0].mxu0
  %v1702 = vadd.f32 %v1630, %v1701
  %v1703 = vpop.f32.mrb[0].mxu0
  %1704 = vdwg.mxu0
  %v1705 = vld [vmem:[%s15] sm:$0xff]
  %v1706 = vld [vmem:[%s15 + $0x8] sm:$0xff]
  %v1707 = vld [vmem:[%s15 + $0x10] sm:$0xff]
  %v1708 = vld [vmem:[%s15 + $0x18] sm:$0xff]
  %v1709 = vld [vmem:[%s15 + $0x20] sm:$0xff]
  %v1710 = vld [vmem:[%s15 + $0x28] sm:$0xff]
  %v1711 = vld [vmem:[%s15 + $0x30] sm:$0xff]
  %v1712 = vld [vmem:[%s15 + $0x38] sm:$0xff]
  %v1713 = vld [vmem:[%s16] sm:$0x1]
  %v1715 = vlaneseq
  %v1716 = vshrl.u32 %v1715, 7
  %v1717 = vsub.s32 0, %v1716
  %v1718 = vrot.slane %v1713, %v1717
  %v1721 = vsel %vm287, %v1702, 0
  %1723 = vmatprep.subr.mxu0 0.0
  %1724 = vmatpush1.msra.mxu0 %v1705
  %1725 = vmatprep.subr.mxu0 0.0
  %1726 = vmatpush1.msra.mxu0 %v1706
  %1727 = vmatprep.subr.mxu0 0.0
  %1728 = vmatpush1.msra.mxu0 %v1707
  %1729 = vmatprep.subr.mxu0 0.0
  %1730 = vmatpush1.msra.mxu0 %v1708
  %1731 = vmatprep.subr.mxu0 0.0
  %1732 = vmatpush1.msra.mxu0 %v1709
  %1733 = vmatprep.subr.mxu0 0.0
  %1734 = vmatpush1.msra.mxu0 %v1710
  %1735 = vmatprep.subr.mxu0 0.0
  %1736 = vmatpush1.msra.mxu0 %v1711
  %1737 = vmatprep.subr.mxu0 0.0
  %1738 = vmatpush1.msra.mxu0 %v1712
  %1739 = vmatprep.subr.mxu0 0.0
  %1740 = vmatpush1.msra.mxu0 0.0
  %1741 = vmatprep.subr.mxu0 0.0
  %1742 = vmatpush1.msra.mxu0 0.0
  %1743 = vmatprep.subr.mxu0 0.0
  %1744 = vmatpush1.msra.mxu0 0.0
  %1745 = vmatprep.subr.mxu0 0.0
  %1746 = vmatpush1.msra.mxu0 0.0
  %1747 = vmatprep.subr.mxu0 0.0
  %1748 = vmatpush1.msra.mxu0 0.0
  %1749 = vmatprep.subr.mxu0 0.0
  %1750 = vmatpush1.msra.mxu0 0.0
  %1751 = vmatprep.subr.mxu0 0.0
  %1752 = vmatpush1.msra.mxu0 0.0
  %1753 = vmatprep.subr.mxu0 0.0
  %1754 = vmatpush1.msra.mxu0 0.0
  %1755 = vmatprep.subr.mxu0 0.0
  %1756 = vmatpush1.msra.mxu0 0.0
  %1757 = vmatprep.subr.mxu0 0.0
  %1758 = vmatpush1.msra.mxu0 0.0
  %1759 = vmatprep.subr.mxu0 0.0
  %1760 = vmatpush1.msra.mxu0 0.0
  %1761 = vmatprep.subr.mxu0 0.0
  %1762 = vmatpush1.msra.mxu0 0.0
  %1763 = vmatprep.subr.mxu0 0.0
  %1764 = vmatpush1.msra.mxu0 0.0
  %1765 = vmatprep.subr.mxu0 0.0
  %1766 = vmatpush1.msra.mxu0 0.0
  %1767 = vmatprep.subr.mxu0 0.0
  %1768 = vmatpush1.msra.mxu0 0.0
  %1769 = vmatprep.subr.mxu0 0.0
  %1770 = vmatpush1.msra.mxu0 0.0
  %1771 = vmatprep.subr.mxu0 0.0
  %1772 = vmatpush1.msra.mxu0 0.0
  %1773 = vmatprep.subr.mxu0 0.0
  %1774 = vmatpush1.msra.mxu0 0.0
  %1775 = vmatprep.subr.mxu0 0.0
  %1776 = vmatpush1.msra.mxu0 0.0
  %1777 = vmatprep.subr.mxu0 0.0
  %1778 = vmatpush1.msra.mxu0 0.0
  %1779 = vmatprep.subr.mxu0 0.0
  %1780 = vmatpush1.msra.mxu0 0.0
  %1781 = vmatprep.subr.mxu0 0.0
  %1782 = vmatpush1.msra.mxu0 0.0
  %1783 = vmatprep.subr.mxu0 0.0
  %1784 = vmatpush1.msra.mxu0 0.0
  %1785 = vmatprep.subr.mxu0 0.0
  %1786 = vmatpush1.msra.mxu0 0.0
  %1787 = vmatprep.mubr.f32.mxu0 0.0
  %1788 = vmatmul.mubr.f32.gmra.mrb[0].mxu0 %v1721
  %v1789 = vpop.f32.mrb[0].mxu0
  %v1790 = vadd.f32 %v1718, %v1789
  %v1791 = vpop.f32.mrb[0].mxu0
  %1792 = vdwg.mxu0
  %vm1793 = vcmask 64512
  %1794 = vst.msk [vmem:[%s17] sm:$0xff] %vm1793, %v1790
  // Predicated region
  $region70: #{node_locator_forward.1} parent=0 // pred_check
    _
  $region71: #{node_locator_forward.1} parent=0 // pred_check_branch
    %1796 = sbr.rel (0) target = $region73
  $region72: #{node_locator_forward.1} parent=0 // pred_region
    _
  $region73: #{node_locator_forward.1} parent=0 // pred_fallthru
    _
  // Predicated region
  $region74: #{node_locator_forward.1} parent=0 // pred_check
    _
  $region75: #{node_locator_forward.1} parent=0 // pred_check_branch
    %1798 = sbr.rel (0) target = $region77
  $region76: #{node_locator_forward.1} parent=0 // pred_region
    _
  $region77: #{node_locator_forward.1} parent=0 // pred_fallthru
    _

</llo_original>
